<compile_context>
chip_gen: v7x
topology: tpu7x:2x2x1
jax: 0.10.0
libtpu: 0.0.40
codegen_flags: <defaults>
</compile_context>

<pallas_src>
import jax
import jax.numpy as jnp
import numpy as np
from jax.experimental import pallas as pl
from jax.experimental.pallas import tpu as pltpu


# ---------------------------------------------------------------------------
# Weight-slab layout (row offsets; width = 512 lanes; dtype = bf16)
# ---------------------------------------------------------------------------
_SLAB_H, _SLAB_W = 1024, 512
_W1_R, _W1_H, _W1_W = 0, 176, 161      # conv1 folded (+ bias column 160)
_W2_R, _W2_H, _W2_W = 176, 160, 441    # conv2 folded (+ bias column 440)
_F1_R = 336                            # fc1: 5 stacked blocks of (80, 128)
_F2_R = 736                            # fc2: (128, 128), rows = k, cols = n
_F3_R = 864                            # fc3: (128, 128)
_B_R = 992                             # 3 bias rows: bf1, bf2, bf3


# ---------------------------------------------------------------------------
# The single fused kernel
# ---------------------------------------------------------------------------
def _lenet_kernel(x_ref, w_ref, o_ref):
    f32, bf16 = jnp.float32, jnp.bfloat16
    x = x_ref[...].astype(bf16)                                     # (32, 32)

    # ---- conv1 (1->6, 5x5, valid) + bias as ONE folded matmul --------------
    # xs1 row kj*32+u holds x[u, kj:kj+28]; row 160 is the ones (bias) row.
    # w row p*88 + t*6 + c holds filter c placed for output row oh = 2t + p.
    xs1 = jnp.concatenate([x[:, kj:kj + 28] for kj in range(5)]
                          + [jnp.ones((1, 28), bf16)], axis=0)      # (161, 28)
    out1 = jnp.dot(w_ref[_W1_R:_W1_R + _W1_H, 0:_W1_W], xs1,
                   preferred_element_type=f32)                      # (176, 28)

    # ---- pool1 (2x2 / 2) + relu, column-dilated (no lane compaction) -------
    rm1 = jnp.maximum(out1[0:88, :], out1[88:176, :])               # even vs odd rows
    cm1 = jnp.maximum(rm1[:, 0:27], rm1[:, 1:28])                   # (88, 27)
    # pooled col j lives at lane 2j; odd lanes are garbage, never consumed.
    r1 = jnp.maximum(cm1, 0.0).astype(bf16)                         # rows t*6 + c

    # ---- conv2 (6->16, 5x5) + bias as ONE folded matmul ---------------------
    # block kj, lane q reads r1 lane 2kj+q; only even q (= 2*ow) are consumed.
    xs2 = jnp.concatenate([r1[:, 2 * kj:2 * kj + 19] for kj in range(5)]
                          + [jnp.ones((1, 19), bf16)], axis=0)      # (441, 19)
    out2 = jnp.dot(w_ref[_W2_R:_W2_R + _W2_H, 0:_W2_W], xs2,
                   preferred_element_type=f32)                      # (160, 19)

    # ---- pool2 (2x2 / 2) + relu; pooled col l lives at lane 4l --------------
    rm2 = jnp.maximum(out2[0:80, :], out2[80:160, :])               # (80, 19)
    cp2 = jnp.maximum(rm2[:, 0:17], rm2[:, 2:19])                   # (80, 17)
    v = jnp.maximum(cp2, 0.0)                                       # rows o*5 + i

    # ---- fc1: lane-broadcast multiplies + one sublane reduction (VPU/XLU) ---
    # lane-dense (1,128) result; no transpose and no extra MXU pass.
    s = v[:, 0:1] * w_ref[_F1_R:_F1_R + 80, 0:128].astype(f32)
    for l in range(1, 5):
        blk = w_ref[_F1_R + 80 * l:_F1_R + 80 * (l + 1), 0:128].astype(f32)
        s = s + v[:, 4 * l:4 * l + 1] * blk
    bias = w_ref[_B_R:_B_R + 3, 0:128].astype(f32)                  # bf1/bf2/bf3 rows
    h1 = jnp.maximum(jnp.sum(s, axis=0, keepdims=True) + bias[0:1], 0.0)  # (1, 128)

    # ---- fc2 / fc3 as lane-dense row-vector matmuls -------------------------
    h2 = jnp.dot(h1.astype(bf16), w_ref[_F2_R:_F2_R + 128, 0:128],
                 preferred_element_type=f32) + bias[1:2]
    h2 = jnp.maximum(h2, 0.0)
    o_ref[...] = jnp.dot(h2.astype(bf16), w_ref[_F3_R:_F3_R + 128, 0:128],
                         preferred_element_type=f32) + bias[2:3]    # (1, 128)


_VMEM = pl.BlockSpec(memory_space=pltpu.MemorySpace.VMEM)


def lenet_pallas(x2d, slab):
    return pl.pallas_call(
        _lenet_kernel,
        out_shape=jax.ShapeDtypeStruct((1, 128), jnp.float32),
        in_specs=[_VMEM, _VMEM],
        out_specs=_VMEM,
    )(x2d, slab)


# ---------------------------------------------------------------------------
# One-time weight repacking into the bf16 slab (outside the hot path)
# ---------------------------------------------------------------------------
def prepare_params(p):
    f32 = np.float32
    w1 = np.asarray(p["w1"], f32); b1 = np.asarray(p["b1"], f32)
    w2 = np.asarray(p["w2"], f32); b2 = np.asarray(p["b2"], f32)
    wf1 = np.asarray(p["wf1"], f32); bf1 = np.asarray(p["bf1"], f32)
    wf2 = np.asarray(p["wf2"], f32); bf2 = np.asarray(p["bf2"], f32)
    wf3 = np.asarray(p["wf3"], f32); bf3 = np.asarray(p["bf3"], f32)

    slab = np.zeros((_SLAB_H, _SLAB_W), f32)

    # conv1 folded: row = par*88 + t*6 + c (output row oh = 2t + par),
    # col = kj*32 + (2t + par + ki); bias in col 160 (multiplies the ones-row).
    W1e = np.zeros((_W1_H, _W1_W), f32)
    par, t, c, ki, kj = np.meshgrid(np.arange(2), np.arange(14), np.arange(6),
                                    np.arange(5), np.arange(5), indexing="ij")
    W1e[(par * 88 + t * 6 + c).ravel(),
        (kj * 32 + 2 * t + par + ki).ravel()] = w1[c.ravel(), 0,
                                                   ki.ravel(), kj.ravel()]
    W1e[:, 160] = np.tile(np.concatenate([np.tile(b1, 14), np.zeros(4, f32)]), 2)
    slab[_W1_R:_W1_R + _W1_H, 0:_W1_W] = W1e

    # conv2 folded: row = par*80 + o*5 + i (output row oh = 2i + par),
    # col = kj*88 + (2i + par + ki)*6 + c; bias in col 440.
    W2e = np.zeros((_W2_H, _W2_W), f32)
    par, i, o, c, ki, kj = np.meshgrid(np.arange(2), np.arange(5), np.arange(16),
                                       np.arange(6), np.arange(5), np.arange(5),
                                       indexing="ij")
    W2e[(par * 80 + o * 5 + i).ravel(),
        (kj * 88 + (2 * i + par + ki) * 6 + c).ravel()] = w2[o.ravel(), c.ravel(),
                                                             ki.ravel(), kj.ravel()]
    W2e[:, 440] = np.tile(np.repeat(b2, 5), 2)
    slab[_W2_R:_W2_R + _W2_H, 0:_W2_W] = W2e

    # fc1 blocks: slab[_F1_R + l*80 + o*5 + i, n] = wf1[n, o*25 + i*5 + l]
    # (matches the PyTorch C-major flatten of the (16,5,5) activation).
    slab[_F1_R:_F1_R + 400, 0:120] = (
        wf1.reshape(120, 16, 5, 5).transpose(3, 1, 2, 0).reshape(400, 120))

    # fc2 / fc3 stored K-major (rows = input index, cols = output index).
    slab[_F2_R:_F2_R + 120, 0:84] = wf2.T
    slab[_F3_R:_F3_R + 84, 0:10] = wf3.T

    # bias rows for fc1 / fc2 / fc3.
    slab[_B_R, 0:120] = bf1
    slab[_B_R + 1, 0:84] = bf2
    slab[_B_R + 2, 0:10] = bf3

    return jnp.asarray(slab, jnp.bfloat16)


@jax.jit
def net_forward(x_nchw, slab):
    assert x_nchw.shape[0] == 1 and x_nchw.shape[1] == 1   # batch==1 contract
    row = lenet_pallas(x_nchw[0, 0], slab)                 # (1,128); lanes 0..9 = logits
    # TODO(synk): the reference forward() has no return statement (returns
    # None); we return the fc3 activations it computes.
    return row[:, :10]


# ---------------------------------------------------------------------------
# Parameter init (PyTorch-default-style uniform) and pure-JAX reference
# ---------------------------------------------------------------------------
def init_params(key):
    def uniform(k, shape, fan_in):
        bound = 1.0 / (fan_in ** 0.5)
        return jax.random.uniform(k, shape, jnp.float32, -bound, bound)

    ks = jax.random.split(key, 10)
    return {
        "w1": uniform(ks[0], (6, 1, 5, 5), 1 * 25),
        "b1": uniform(ks[1], (6,), 1 * 25),
        "w2": uniform(ks[2], (16, 6, 5, 5), 6 * 25),
        "b2": uniform(ks[3], (16,), 6 * 25),
        "wf1": uniform(ks[4], (120, 400), 400),
        "bf1": uniform(ks[5], (120,), 400),
        "wf2": uniform(ks[6], (84, 120), 120),
        "bf2": uniform(ks[7], (84,), 120),
        "wf3": uniform(ks[8], (10, 84), 84),
        "bf3": uniform(ks[9], (10,), 84),
    }


def net_reference(x, p):
    dn = ("NCHW", "OIHW", "NCHW")
    prec = jax.lax.Precision.HIGHEST
    y = jax.lax.conv_general_dilated(x, p["w1"], (1, 1), "VALID",
                                     dimension_numbers=dn, precision=prec)
    y = jnp.maximum(y + p["b1"][None, :, None, None], 0.0)
    y = jax.lax.reduce_window(y, -jnp.inf, jax.lax.max, (1, 1, 2, 2), (1, 1, 2, 2), "VALID")
    y = jax.lax.conv_general_dilated(y, p["w2"], (1, 1), "VALID",
                                     dimension_numbers=dn, precision=prec)
    y = jnp.maximum(y + p["b2"][None, :, None, None], 0.0)
    y = jax.lax.reduce_window(y, -jnp.inf, jax.lax.max, (1, 1, 2, 2), (1, 1, 2, 2), "VALID")
    y = y.reshape(1, -1)
    y = jnp.maximum(jnp.dot(y, p["wf1"].T, precision=prec) + p["bf1"], 0.0)
    y = jnp.maximum(jnp.dot(y, p["wf2"].T, precision=prec) + p["bf2"], 0.0)
    return jnp.dot(y, p["wf3"].T, precision=prec) + p["bf3"]


if __name__ == "__main__":
    key = jax.random.PRNGKey(0)
    kx, kp = jax.random.split(key)
    x = jax.random.normal(kx, (1, 1, 32, 32), jnp.float32)  # LeNet needs 32x32 input
    params = init_params(kp)

    slab = prepare_params(params)            # one-time weight repacking
    out = jax.block_until_ready(net_forward(x, slab))

    ref = net_reference(x, params)
    assert out.shape == (1, 10), out.shape
    # bf16 MXU operands -> tolerance loosened vs. the f32 XLA reference.
    assert jnp.allclose(out, ref, atol=2e-2, rtol=2e-2), (out, ref)
    print("KERNEL_OK")
</pallas_src>

<mosaic_0001>
module attributes {stable_mosaic.version = 11 : i64} {
  func.func @_lenet_kernel(%arg0: memref<32x32xf32, #tpu.memory_space<vmem>>, %arg1: memref<1024x512xbf16, #tpu.memory_space<vmem>>, %arg2: memref<1x128xf32, #tpu.memory_space<vmem>>) attributes {dimension_semantics = [], scalar_prefetch = 0 : i64, scratch_operands = 0 : i64, tpu.core_type = #tpu.core_type<tc>} {
    %c0 = arith.constant 0 : index
    %c0_0 = arith.constant 0 : index
    %0 = vector.load %arg0[%c0, %c0_0] : memref<32x32xf32, #tpu.memory_space<vmem>>, vector<32x32xf32>
    %1 = arith.truncf %0 : vector<32x32xf32> to vector<32x32xbf16>
    %2 = vector.extract_strided_slice %1 {offsets = [0, 0], sizes = [32, 28], strides = [1, 1]} : vector<32x32xbf16> to vector<32x28xbf16>
    %3 = vector.extract_strided_slice %1 {offsets = [0, 1], sizes = [32, 28], strides = [1, 1]} : vector<32x32xbf16> to vector<32x28xbf16>
    %4 = vector.extract_strided_slice %1 {offsets = [0, 2], sizes = [32, 28], strides = [1, 1]} : vector<32x32xbf16> to vector<32x28xbf16>
    %5 = vector.extract_strided_slice %1 {offsets = [0, 3], sizes = [32, 28], strides = [1, 1]} : vector<32x32xbf16> to vector<32x28xbf16>
    %6 = vector.extract_strided_slice %1 {offsets = [0, 4], sizes = [32, 28], strides = [1, 1]} : vector<32x32xbf16> to vector<32x28xbf16>
    %cst = arith.constant 1.000000e+00 : bf16
    %7 = vector.broadcast %cst : bf16 to vector<1x28xbf16>
    %8 = tpu.concatenate %2, %3, %4, %5, %6, %7 in 0 : vector<32x28xbf16>, vector<32x28xbf16>, vector<32x28xbf16>, vector<32x28xbf16>, vector<32x28xbf16>, vector<1x28xbf16> -> vector<161x28xbf16>
    %c0_1 = arith.constant 0 : index
    %c0_2 = arith.constant 0 : index
    %9 = vector.load %arg1[%c0_1, %c0_2] : memref<1024x512xbf16, #tpu.memory_space<vmem>>, vector<176x161xbf16>
    %cst_3 = arith.constant dense<0.000000e+00> : vector<176x28xf32>
    %10 = tpu.matmul %9, %8, %cst_3 {dimension_numbers = #tpu.dot_dimension_numbers<[1], [0], [0], [1], [0, 0, 1, 1], [], []>} : vector<176x161xbf16>, vector<161x28xbf16>, vector<176x28xf32> -> vector<176x28xf32>
    %11 = vector.extract_strided_slice %10 {offsets = [0, 0], sizes = [88, 28], strides = [1, 1]} : vector<176x28xf32> to vector<88x28xf32>
    %12 = vector.extract_strided_slice %10 {offsets = [88, 0], sizes = [88, 28], strides = [1, 1]} : vector<176x28xf32> to vector<88x28xf32>
    %13 = arith.maximumf %11, %12 : vector<88x28xf32>
    %14 = vector.extract_strided_slice %13 {offsets = [0, 0], sizes = [88, 27], strides = [1, 1]} : vector<88x28xf32> to vector<88x27xf32>
    %15 = vector.extract_strided_slice %13 {offsets = [0, 1], sizes = [88, 27], strides = [1, 1]} : vector<88x28xf32> to vector<88x27xf32>
    %16 = arith.maximumf %14, %15 : vector<88x27xf32>
    %cst_4 = arith.constant 0.000000e+00 : f32
    %17 = vector.broadcast %cst_4 : f32 to vector<88x27xf32>
    %18 = arith.maximumf %16, %17 : vector<88x27xf32>
    %19 = arith.truncf %18 : vector<88x27xf32> to vector<88x27xbf16>
    %20 = vector.extract_strided_slice %19 {offsets = [0, 0], sizes = [88, 19], strides = [1, 1]} : vector<88x27xbf16> to vector<88x19xbf16>
    %21 = vector.extract_strided_slice %19 {offsets = [0, 2], sizes = [88, 19], strides = [1, 1]} : vector<88x27xbf16> to vector<88x19xbf16>
    %22 = vector.extract_strided_slice %19 {offsets = [0, 4], sizes = [88, 19], strides = [1, 1]} : vector<88x27xbf16> to vector<88x19xbf16>
    %23 = vector.extract_strided_slice %19 {offsets = [0, 6], sizes = [88, 19], strides = [1, 1]} : vector<88x27xbf16> to vector<88x19xbf16>
    %24 = vector.extract_strided_slice %19 {offsets = [0, 8], sizes = [88, 19], strides = [1, 1]} : vector<88x27xbf16> to vector<88x19xbf16>
    %cst_5 = arith.constant 1.000000e+00 : bf16
    %25 = vector.broadcast %cst_5 : bf16 to vector<1x19xbf16>
    %26 = tpu.concatenate %20, %21, %22, %23, %24, %25 in 0 : vector<88x19xbf16>, vector<88x19xbf16>, vector<88x19xbf16>, vector<88x19xbf16>, vector<88x19xbf16>, vector<1x19xbf16> -> vector<441x19xbf16>
    %c176 = arith.constant 176 : index
    %c0_6 = arith.constant 0 : index
    %27 = vector.load %arg1[%c176, %c0_6] : memref<1024x512xbf16, #tpu.memory_space<vmem>>, vector<160x441xbf16>
    %cst_7 = arith.constant dense<0.000000e+00> : vector<160x19xf32>
    %28 = tpu.matmul %27, %26, %cst_7 {dimension_numbers = #tpu.dot_dimension_numbers<[1], [0], [0], [1], [0, 0, 1, 1], [], []>} : vector<160x441xbf16>, vector<441x19xbf16>, vector<160x19xf32> -> vector<160x19xf32>
    %29 = vector.extract_strided_slice %28 {offsets = [0, 0], sizes = [80, 19], strides = [1, 1]} : vector<160x19xf32> to vector<80x19xf32>
    %30 = vector.extract_strided_slice %28 {offsets = [80, 0], sizes = [80, 19], strides = [1, 1]} : vector<160x19xf32> to vector<80x19xf32>
    %31 = arith.maximumf %29, %30 : vector<80x19xf32>
    %32 = vector.extract_strided_slice %31 {offsets = [0, 0], sizes = [80, 17], strides = [1, 1]} : vector<80x19xf32> to vector<80x17xf32>
    %33 = vector.extract_strided_slice %31 {offsets = [0, 2], sizes = [80, 17], strides = [1, 1]} : vector<80x19xf32> to vector<80x17xf32>
    %34 = arith.maximumf %32, %33 : vector<80x17xf32>
    %cst_8 = arith.constant 0.000000e+00 : f32
    %35 = vector.broadcast %cst_8 : f32 to vector<80x17xf32>
    %36 = arith.maximumf %34, %35 : vector<80x17xf32>
    %37 = vector.extract_strided_slice %36 {offsets = [0, 0], sizes = [80, 1], strides = [1, 1]} : vector<80x17xf32> to vector<80x1xf32>
    %c336 = arith.constant 336 : index
    %c0_9 = arith.constant 0 : index
    %38 = vector.load %arg1[%c336, %c0_9] : memref<1024x512xbf16, #tpu.memory_space<vmem>>, vector<80x128xbf16>
    %39 = arith.extf %38 : vector<80x128xbf16> to vector<80x128xf32>
    %40 = vector.broadcast %37 : vector<80x1xf32> to vector<80x128xf32>
    %41 = arith.mulf %40, %39 : vector<80x128xf32>
    %c416 = arith.constant 416 : index
    %c0_10 = arith.constant 0 : index
    %42 = vector.load %arg1[%c416, %c0_10] : memref<1024x512xbf16, #tpu.memory_space<vmem>>, vector<80x128xbf16>
    %43 = arith.extf %42 : vector<80x128xbf16> to vector<80x128xf32>
    %44 = vector.extract_strided_slice %36 {offsets = [0, 4], sizes = [80, 1], strides = [1, 1]} : vector<80x17xf32> to vector<80x1xf32>
    %45 = vector.broadcast %44 : vector<80x1xf32> to vector<80x128xf32>
    %46 = arith.mulf %45, %43 : vector<80x128xf32>
    %47 = arith.addf %41, %46 : vector<80x128xf32>
    %c496 = arith.constant 496 : index
    %c0_11 = arith.constant 0 : index
    %48 = vector.load %arg1[%c496, %c0_11] : memref<1024x512xbf16, #tpu.memory_space<vmem>>, vector<80x128xbf16>
    %49 = arith.extf %48 : vector<80x128xbf16> to vector<80x128xf32>
    %50 = vector.extract_strided_slice %36 {offsets = [0, 8], sizes = [80, 1], strides = [1, 1]} : vector<80x17xf32> to vector<80x1xf32>
    %51 = vector.broadcast %50 : vector<80x1xf32> to vector<80x128xf32>
    %52 = arith.mulf %51, %49 : vector<80x128xf32>
    %53 = arith.addf %47, %52 : vector<80x128xf32>
    %c576 = arith.constant 576 : index
    %c0_12 = arith.constant 0 : index
    %54 = vector.load %arg1[%c576, %c0_12] : memref<1024x512xbf16, #tpu.memory_space<vmem>>, vector<80x128xbf16>
    %55 = arith.extf %54 : vector<80x128xbf16> to vector<80x128xf32>
    %56 = vector.extract_strided_slice %36 {offsets = [0, 12], sizes = [80, 1], strides = [1, 1]} : vector<80x17xf32> to vector<80x1xf32>
    %57 = vector.broadcast %56 : vector<80x1xf32> to vector<80x128xf32>
    %58 = arith.mulf %57, %55 : vector<80x128xf32>
    %59 = arith.addf %53, %58 : vector<80x128xf32>
    %c656 = arith.constant 656 : index
    %c0_13 = arith.constant 0 : index
    %60 = vector.load %arg1[%c656, %c0_13] : memref<1024x512xbf16, #tpu.memory_space<vmem>>, vector<80x128xbf16>
    %61 = arith.extf %60 : vector<80x128xbf16> to vector<80x128xf32>
    %62 = vector.extract_strided_slice %36 {offsets = [0, 16], sizes = [80, 1], strides = [1, 1]} : vector<80x17xf32> to vector<80x1xf32>
    %63 = vector.broadcast %62 : vector<80x1xf32> to vector<80x128xf32>
    %64 = arith.mulf %63, %61 : vector<80x128xf32>
    %65 = arith.addf %59, %64 : vector<80x128xf32>
    %c992 = arith.constant 992 : index
    %c0_14 = arith.constant 0 : index
    %66 = vector.load %arg1[%c992, %c0_14] : memref<1024x512xbf16, #tpu.memory_space<vmem>>, vector<3x128xbf16>
    %67 = arith.extf %66 : vector<3x128xbf16> to vector<3x128xf32>
    %cst_15 = arith.constant dense<0.000000e+00> : vector<128xf32>
    %68 = vector.multi_reduction <add>, %65, %cst_15 [0] : vector<80x128xf32> to vector<128xf32>
    %69 = vector.shape_cast %68 : vector<128xf32> to vector<1x128xf32>
    %70 = vector.extract_strided_slice %67 {offsets = [0, 0], sizes = [1, 128], strides = [1, 1]} : vector<3x128xf32> to vector<1x128xf32>
    %71 = arith.addf %69, %70 : vector<1x128xf32>
    %cst_16 = arith.constant 0.000000e+00 : f32
    %72 = vector.broadcast %cst_16 : f32 to vector<1x128xf32>
    %73 = arith.maximumf %71, %72 : vector<1x128xf32>
    %74 = arith.truncf %73 : vector<1x128xf32> to vector<1x128xbf16>
    %c736 = arith.constant 736 : index
    %c0_17 = arith.constant 0 : index
    %75 = vector.load %arg1[%c736, %c0_17] : memref<1024x512xbf16, #tpu.memory_space<vmem>>, vector<128x128xbf16>
    %cst_18 = arith.constant dense<0.000000e+00> : vector<1x128xf32>
    %76 = tpu.matmul %74, %75, %cst_18 {dimension_numbers = #tpu.dot_dimension_numbers<[1], [0], [0], [1], [0, 0, 1, 1], [], []>} : vector<1x128xbf16>, vector<128x128xbf16>, vector<1x128xf32> -> vector<1x128xf32>
    %77 = vector.extract_strided_slice %67 {offsets = [1, 0], sizes = [1, 128], strides = [1, 1]} : vector<3x128xf32> to vector<1x128xf32>
    %78 = arith.addf %76, %77 : vector<1x128xf32>
    %cst_19 = arith.constant 0.000000e+00 : f32
    %79 = vector.broadcast %cst_19 : f32 to vector<1x128xf32>
    %80 = arith.maximumf %78, %79 : vector<1x128xf32>
    %81 = arith.truncf %80 : vector<1x128xf32> to vector<1x128xbf16>
    %c864 = arith.constant 864 : index
    %c0_20 = arith.constant 0 : index
    %82 = vector.load %arg1[%c864, %c0_20] : memref<1024x512xbf16, #tpu.memory_space<vmem>>, vector<128x128xbf16>
    %cst_21 = arith.constant dense<0.000000e+00> : vector<1x128xf32>
    %83 = tpu.matmul %81, %82, %cst_21 {dimension_numbers = #tpu.dot_dimension_numbers<[1], [0], [0], [1], [0, 0, 1, 1], [], []>} : vector<1x128xbf16>, vector<128x128xbf16>, vector<1x128xf32> -> vector<1x128xf32>
    %84 = vector.extract_strided_slice %67 {offsets = [2, 0], sizes = [1, 128], strides = [1, 1]} : vector<3x128xf32> to vector<1x128xf32>
    %85 = arith.addf %83, %84 : vector<1x128xf32>
    %c0_22 = arith.constant 0 : index
    %c0_23 = arith.constant 0 : index
    %86 = vector.load %arg2[%c0_22, %c0_23] : memref<1x128xf32, #tpu.memory_space<vmem>>, vector<1x128xf32>
    tpu.vector_store %arg2[%c0_22, %c0_23], %85 {strides = array<i32>} : memref<1x128xf32, #tpu.memory_space<vmem>>, vector<1x128xf32>,
    return
  }
}

</mosaic_0001>

<llo_original>
// kernel: net_forward.1
$region0: #{net_forward.1}
  #allocation0 [shape = 'u32[]', space=smem, size = 0x4, offset = 0x4, fixed_abs, tag = 'smem constant byte address 0x4 - core index']
  #allocation1 [shape = 'u32[144,128]{1,0:T(1,128)}', space=vmem, size = 0x12000, scoped, tag = 'internal scratch']
  %s0 = inlined_call_operand.hbm [shape: f32[32,32], index: 0, kind: input, shape index: {}]
  %s1 = inlined_call_operand.hbm [shape: bf16[1024,512], index: 1, kind: input, shape index: {}]
  %s2 = inlined_call_operand.hbm [shape: f32[1,128], index: 2, kind: output, shape index: {}]
  %s3 = sld [smem:[#allocation0]]
  $region26: #{net_forward.1} parent=0
    _
  %s5 = ssub.s32 1, %s3
  %s6 = scalar_select 0, %s5, %s3
  $region1: #{net_forward.1} parent=0
    #allocation2 [shape = 'u8[16384]{0}', space=vmem, size = 0x4000, scoped, tag = 'input window, operand 0, single buffered']
    #allocation3 [shape = 's32[1]{0}', space=sflag, size = 0x4, scoped, tag = 'scoped memory for net_forward.1']
    #allocation4 [shape = 's32[1]{0}', space=sflag, size = 0x4, scoped, tag = 'scoped memory for net_forward.1']
    #allocation5 [shape = 'u8[1048576]{0}', space=vmem, size = 0x100000, scoped, tag = 'input window, operand 1, single buffered']
    #allocation6 [shape = 's32[1]{0}', space=sflag, size = 0x4, scoped, tag = 'scoped memory for net_forward.1']
    #allocation7 [shape = 'u8[512]{0}', space=vmem, size = 0x400, scoped, tag = 'output window, operand 0, single buffered']
    %7 = vsyncpa [#allocation3], 0
    %8 = vsyncpa [#allocation6], 0
    %9 = vsyncpa [#allocation4], 0
    // Predicated region
    $region2: #{net_forward.1} parent=1 // pred_check
      _
    $region3: #{net_forward.1} parent=1 // pred_check_branch
      %11 = sbr.rel (0) target = $region5
    $region4: #{net_forward.1} parent=1 // pred_region
      %s13 = ssub.s32 512, 512
      %14 = vsyncadd [#allocation3], %s13
      %s15 = sshll.u32 [#allocation2], 4
      %s16 = int_to_ptr.vmem [resolvable:$true] %s15
      %21 = dma.hbm_to_vmem [thread:$0]  %s0, 512, %s16, [#allocation3], 128, 128, 8
    $region5: #{net_forward.1} parent=1 // pred_fallthru
      _
    // Predicated region
    $region6: #{net_forward.1} parent=1 // pred_check
      _
    $region7: #{net_forward.1} parent=1 // pred_check_branch
      %23 = sbr.rel (0) target = $region9
    $region8: #{net_forward.1} parent=1 // pred_region
      %s25 = ssub.s32 32768, 32768
      %26 = vsyncadd [#allocation6], %s25
      %s27 = sshll.u32 [#allocation5], 4
      %s28 = int_to_ptr.vmem [resolvable:$true] %s27
      %33 = dma.hbm_to_vmem [thread:$0]  %s1, 32768, %s28, [#allocation6], 256, 256, 16
    $region9: #{net_forward.1} parent=1 // pred_fallthru
      _
    // Predicated region
    $region10: #{net_forward.1} parent=1 // pred_check
      _
    $region11: #{net_forward.1} parent=1 // pred_check_branch
      %35 = sbr.rel (0) target = $region13
    $region12: #{net_forward.1} parent=1 // pred_region
      %36 = dma.done [#allocation3], 512
    $region13: #{net_forward.1} parent=1 // pred_fallthru
      _
    // Predicated region
    $region14: #{net_forward.1} parent=1 // pred_check
      _
    $region15: #{net_forward.1} parent=1 // pred_check_branch
      %38 = sbr.rel (0) target = $region17
    $region16: #{net_forward.1} parent=1 // pred_region
      %39 = dma.done [#allocation6], 32768
    $region17: #{net_forward.1} parent=1 // pred_fallthru
      _
    %v42 = vld [vmem:[#allocation2] sm:$0xff]
    %v43 = vld [vmem:[#allocation2 + $0x8] sm:$0xff]
    %v44 = vld [vmem:[#allocation2 + $0x10] sm:$0xff]
    %v45 = vld [vmem:[#allocation2 + $0x18] sm:$0xff]
    %v46 = vpack.c.bf16 %v43, %v42
    %v47 = vpack.c.bf16 %v45, %v44
    %50 = vrot.lane.b32.xlu0 %v46, 127
    %v51 = vpop.permute.xlu0 %50
    %52 = vrot.lane.b32.xlu0 %v47, 127
    %v53 = vpop.permute.xlu0 %52
    %56 = vrot.lane.b32.xlu0 %v46, 126
    %v57 = vpop.permute.xlu0 %56
    %58 = vrot.lane.b32.xlu0 %v47, 126
    %v59 = vpop.permute.xlu0 %58
    %62 = vrot.lane.b32.xlu0 %v46, 125
    %v63 = vpop.permute.xlu0 %62
    %64 = vrot.lane.b32.xlu0 %v47, 125
    %v65 = vpop.permute.xlu0 %64
    %68 = vrot.lane.b32.xlu0 %v46, 124
    %v69 = vpop.permute.xlu0 %68
    %70 = vrot.lane.b32.xlu0 %v47, 124
    %v71 = vpop.permute.xlu0 %70
    %v74 = vld [vmem:[#allocation5] sm:$0xff]
    %v75 = vld [vmem:[#allocation5 + $0x10] sm:$0xff]
    %v76 = vld [vmem:[#allocation5 + $0x20] sm:$0xff]
    %v77 = vld [vmem:[#allocation5 + $0x30] sm:$0xff]
    %v78 = vld [vmem:[#allocation5 + $0x40] sm:$0xff]
    %v79 = vld [vmem:[#allocation5 + $0x50] sm:$0xff]
    %v80 = vld [vmem:[#allocation5 + $0x60] sm:$0xff]
    %v81 = vld [vmem:[#allocation5 + $0x70] sm:$0xff]
    %v82 = vld [vmem:[#allocation5 + $0x80] sm:$0xff]
    %v83 = vld [vmem:[#allocation5 + $0x90] sm:$0xff]
    %v84 = vld [vmem:[#allocation5 + $0xa0] sm:$0xff]
    %v85 = vld [vmem:[#allocation5 + $0xb0] sm:$0xff]
    %v86 = vld [vmem:[#allocation5 + $0xc0] sm:$0xff]
    %v87 = vld [vmem:[#allocation5 + $0xd0] sm:$0xff]
    %v88 = vld [vmem:[#allocation5 + $0xe0] sm:$0xff]
    %v89 = vld [vmem:[#allocation5 + $0xf0] sm:$0xff]
    %v90 = vld [vmem:[#allocation5 + $0x100] sm:$0xff]
    %v91 = vld [vmem:[#allocation5 + $0x110] sm:$0xff]
    %v92 = vld [vmem:[#allocation5 + $0x120] sm:$0xff]
    %v93 = vld [vmem:[#allocation5 + $0x130] sm:$0xff]
    %v94 = vld [vmem:[#allocation5 + $0x140] sm:$0xff]
    %v95 = vld [vmem:[#allocation5 + $0x150] sm:$0xff]
    %v118 = vunpack.c.l.b16 %v74
    %v119 = vunpack.c.h.b16 %v74
    %v120 = vunpack.c.l.b16 %v75
    %v121 = vunpack.c.h.b16 %v75
    %v122 = vunpack.c.l.b16 %v76
    %v123 = vunpack.c.h.b16 %v76
    %v124 = vunpack.c.l.b16 %v77
    %v125 = vunpack.c.h.b16 %v77
    %v126 = vunpack.c.l.b16 %v78
    %v127 = vunpack.c.h.b16 %v78
    %v128 = vunpack.c.l.b16 %v79
    %v129 = vunpack.c.h.b16 %v79
    %v130 = vunpack.c.l.b16 %v80
    %v131 = vunpack.c.h.b16 %v80
    %v132 = vunpack.c.l.b16 %v81
    %v133 = vunpack.c.h.b16 %v81
    %v134 = vunpack.c.l.b16 %v82
    %v135 = vunpack.c.h.b16 %v82
    %v136 = vunpack.c.l.b16 %v83
    %v137 = vunpack.c.h.b16 %v83
    %v138 = vunpack.c.l.b16 %v84
    %v139 = vunpack.c.h.b16 %v84
    %v140 = vunpack.c.l.b16 %v85
    %v141 = vunpack.c.h.b16 %v85
    %v142 = vunpack.c.l.b16 %v86
    %v143 = vunpack.c.h.b16 %v86
    %v144 = vunpack.c.l.b16 %v87
    %v145 = vunpack.c.h.b16 %v87
    %v146 = vunpack.c.l.b16 %v88
    %v147 = vunpack.c.h.b16 %v88
    %v148 = vunpack.c.l.b16 %v89
    %v149 = vunpack.c.h.b16 %v89
    %v150 = vunpack.c.l.b16 %v90
    %v151 = vunpack.c.h.b16 %v90
    %v152 = vunpack.c.l.b16 %v91
    %v153 = vunpack.c.h.b16 %v91
    %v154 = vunpack.c.l.b16 %v92
    %v155 = vunpack.c.h.b16 %v92
    %v156 = vunpack.c.l.b16 %v93
    %v157 = vunpack.c.h.b16 %v93
    %v158 = vunpack.c.l.b16 %v94
    %v159 = vunpack.c.h.b16 %v94
    %v160 = vunpack.c.l.b16 %v95
    %v161 = vunpack.c.h.b16 %v95
    %v162 = vpack.c.b16 %v120, %v118
    %v163 = vpack.c.b16 %v121, %v119
    %v164 = vpack.c.b16 %v124, %v122
    %v165 = vpack.c.b16 %v125, %v123
    %v166 = vpack.c.b16 %v128, %v126
    %v167 = vpack.c.b16 %v129, %v127
    %v168 = vpack.c.b16 %v132, %v130
    %v169 = vpack.c.b16 %v133, %v131
    %v170 = vpack.c.b16 %v136, %v134
    %v171 = vpack.c.b16 %v137, %v135
    %v172 = vpack.c.b16 %v140, %v138
    %v173 = vpack.c.b16 %v141, %v139
    %v174 = vpack.c.b16 %v144, %v142
    %v175 = vpack.c.b16 %v145, %v143
    %v176 = vpack.c.b16 %v148, %v146
    %v177 = vpack.c.b16 %v149, %v147
    %v178 = vpack.c.b16 %v152, %v150
    %v179 = vpack.c.b16 %v153, %v151
    %v180 = vpack.c.b16 %v156, %v154
    %v181 = vpack.c.b16 %v157, %v155
    %v182 = vpack.c.b16 %v160, %v158
    %v183 = vpack.c.b16 %v161, %v159
    %vm195 = vcmask 269312
    %v197 = vsel %vm195, %v163, 0
    %v200 = vsel %vm195, %v165, 0
    %v203 = vsel %vm195, %v167, 0
    %v206 = vsel %vm195, %v169, 0
    %v209 = vsel %vm195, %v171, 0
    %v212 = vsel %vm195, %v173, 0
    %v215 = vsel %vm195, %v175, 0
    %v218 = vsel %vm195, %v177, 0
    %v221 = vsel %vm195, %v179, 0
    %v224 = vsel %vm195, %v181, 0
    %v227 = vsel %vm195, %v183, 0
    %vm229 = vcmask 1040384
    %v230 = vsel 0, 4294967295, 65535
    %v231 = vsel %vm229, %v230, 0
    %v233 = vand.u32 1065369472, %v231
    %235 = vmatprep.subr.bf16.mxu0 0
    %236 = vmatpush1.bf16.msra.mxu0 %v46
    %237 = vmatprep.subr.bf16.mxu0 0
    %238 = vmatpush1.bf16.msra.mxu0 %v47
    %239 = vmatprep.subr.bf16.mxu0 0
    %240 = vmatpush1.bf16.msra.mxu0 %v51
    %241 = vmatprep.subr.bf16.mxu0 0
    %242 = vmatpush1.bf16.msra.mxu0 %v53
    %243 = vmatprep.subr.bf16.mxu0 0
    %244 = vmatpush1.bf16.msra.mxu0 %v57
    %245 = vmatprep.subr.bf16.mxu0 0
    %246 = vmatpush1.bf16.msra.mxu0 %v59
    %247 = vmatprep.subr.bf16.mxu0 0
    %248 = vmatpush1.bf16.msra.mxu0 %v63
    %249 = vmatprep.subr.bf16.mxu0 0
    %250 = vmatpush1.bf16.msra.mxu0 %v65
    %251 = vmatprep.subr.bf16.mxu0 0
    %252 = vmatpush1.bf16.msra.mxu0 %v69
    %253 = vmatprep.subr.bf16.mxu0 0
    %254 = vmatpush1.bf16.msra.mxu0 %v71
    %255 = vmatprep.subr.bf16.mxu0 0
    %256 = vmatpush1.bf16.msra.mxu0 %v233
    %257 = vmatprep.subr.bf16.mxu0 0
    %258 = vmatpush1.bf16.msra.mxu0 0
    %259 = vmatprep.subr.bf16.mxu0 0
    %260 = vmatpush1.bf16.msra.mxu0 0
    %261 = vmatprep.subr.bf16.mxu0 0
    %262 = vmatpush1.bf16.msra.mxu0 0
    %263 = vmatprep.subr.bf16.mxu0 0
    %264 = vmatpush1.bf16.msra.mxu0 0
    %265 = vmatprep.subr.bf16.mxu0 0
    %266 = vmatpush1.bf16.msra.mxu0 0
    %267 = vmatprep.mubr.bf16.mxu0 %v197
    %268 = vmatmul.mubr.bf16.gmra.mrb[0].mxu0 %v162
    %v269 = vpop.f32.mrb[0].mxu0
    %v270 = vadd.f32 0.0, %v269
    %v271 = vpop.f32.mrb[0].mxu0
    %v272 = vpop.f32.mrb[0].mxu0
    %v273 = vadd.f32 0.0, %v272
    %v274 = vpop.f32.mrb[0].mxu0
    %275 = vmatprep.mubr.bf16.mxu0 %v200
    %276 = vmatmul.mubr.bf16.gmra.mrb[0].mxu0 %v164
    %v277 = vpop.f32.mrb[0].mxu0
    %v278 = vadd.f32 0.0, %v277
    %v279 = vpop.f32.mrb[0].mxu0
    %v280 = vpop.f32.mrb[0].mxu0
    %v281 = vadd.f32 0.0, %v280
    %v282 = vpop.f32.mrb[0].mxu0
    %283 = vmatprep.mubr.bf16.mxu0 %v203
    %284 = vmatmul.mubr.bf16.gmra.mrb[0].mxu0 %v166
    %v285 = vpop.f32.mrb[0].mxu0
    %v286 = vadd.f32 0.0, %v285
    %v287 = vpop.f32.mrb[0].mxu0
    %v288 = vpop.f32.mrb[0].mxu0
    %v289 = vadd.f32 0.0, %v288
    %v290 = vpop.f32.mrb[0].mxu0
    %291 = vmatprep.mubr.bf16.mxu0 %v206
    %292 = vmatmul.mubr.bf16.gmra.mrb[0].mxu0 %v168
    %v293 = vpop.f32.mrb[0].mxu0
    %v294 = vadd.f32 0.0, %v293
    %v295 = vpop.f32.mrb[0].mxu0
    %v296 = vpop.f32.mrb[0].mxu0
    %v297 = vadd.f32 0.0, %v296
    %v298 = vpop.f32.mrb[0].mxu0
    %299 = vmatprep.mubr.bf16.mxu0 %v209
    %300 = vmatmul.mubr.bf16.gmra.mrb[0].mxu0 %v170
    %v301 = vpop.f32.mrb[0].mxu0
    %v302 = vadd.f32 0.0, %v301
    %v303 = vpop.f32.mrb[0].mxu0
    %v304 = vpop.f32.mrb[0].mxu0
    %v305 = vadd.f32 0.0, %v304
    %v306 = vpop.f32.mrb[0].mxu0
    %307 = vmatprep.mubr.bf16.mxu0 %v212
    %308 = vmatmul.mubr.bf16.gmra.mrb[0].mxu0 %v172
    %v309 = vpop.f32.mrb[0].mxu0
    %v310 = vadd.f32 0.0, %v309
    %v311 = vpop.f32.mrb[0].mxu0
    %v312 = vpop.f32.mrb[0].mxu0
    %v313 = vadd.f32 0.0, %v312
    %v314 = vpop.f32.mrb[0].mxu0
    %315 = vmatprep.mubr.bf16.mxu0 %v215
    %316 = vmatmul.mubr.bf16.gmra.mrb[0].mxu0 %v174
    %v317 = vpop.f32.mrb[0].mxu0
    %v318 = vadd.f32 0.0, %v317
    %v319 = vpop.f32.mrb[0].mxu0
    %v320 = vpop.f32.mrb[0].mxu0
    %v321 = vadd.f32 0.0, %v320
    %v322 = vpop.f32.mrb[0].mxu0
    %323 = vmatprep.mubr.bf16.mxu0 %v218
    %324 = vmatmul.mubr.bf16.gmra.mrb[0].mxu0 %v176
    %v325 = vpop.f32.mrb[0].mxu0
    %v326 = vadd.f32 0.0, %v325
    %v327 = vpop.f32.mrb[0].mxu0
    %v328 = vpop.f32.mrb[0].mxu0
    %v329 = vadd.f32 0.0, %v328
    %v330 = vpop.f32.mrb[0].mxu0
    %331 = vmatprep.mubr.bf16.mxu0 %v221
    %332 = vmatmul.mubr.bf16.gmra.mrb[0].mxu0 %v178
    %v333 = vpop.f32.mrb[0].mxu0
    %v334 = vadd.f32 0.0, %v333
    %v335 = vpop.f32.mrb[0].mxu0
    %v336 = vpop.f32.mrb[0].mxu0
    %v337 = vadd.f32 0.0, %v336
    %v338 = vpop.f32.mrb[0].mxu0
    %339 = vmatprep.mubr.bf16.mxu0 %v224
    %340 = vmatmul.mubr.bf16.gmra.mrb[0].mxu0 %v180
    %v341 = vpop.f32.mrb[0].mxu0
    %v342 = vadd.f32 0.0, %v341
    %v343 = vpop.f32.mrb[0].mxu0
    %v344 = vpop.f32.mrb[0].mxu0
    %v345 = vadd.f32 0.0, %v344
    %v346 = vpop.f32.mrb[0].mxu0
    %347 = vmatprep.mubr.bf16.mxu0 %v227
    %348 = vmatmul.mubr.bf16.gmra.mrb[0].mxu0 %v182
    %v349 = vpop.f32.mrb[0].mxu0
    %v350 = vadd.f32 0.0, %v349
    %v351 = vpop.f32.mrb[0].mxu0
    %v352 = vpop.f32.mrb[0].mxu0
    %v353 = vadd.f32 0.0, %v352
    %v354 = vpop.f32.mrb[0].mxu0
    %355 = vdwg.mxu0
    %v356 = vmax.f32 %v270, %v313
    %v357 = vmax.f32 %v273, %v318
    %v358 = vmax.f32 %v278, %v321
    %v359 = vmax.f32 %v281, %v326
    %v360 = vmax.f32 %v286, %v329
    %v361 = vmax.f32 %v289, %v334
    %v362 = vmax.f32 %v294, %v337
    %v363 = vmax.f32 %v297, %v342
    %v364 = vmax.f32 %v302, %v345
    %v365 = vmax.f32 %v305, %v350
    %v366 = vmax.f32 %v310, %v353
    %378 = vrot.lane.b32.xlu0 %v356, 127
    %v379 = vpop.permute.xlu0 %378
    %380 = vrot.lane.b32.xlu0 %v357, 127
    %v381 = vpop.permute.xlu0 %380
    %382 = vrot.lane.b32.xlu0 %v358, 127
    %v383 = vpop.permute.xlu0 %382
    %384 = vrot.lane.b32.xlu0 %v359, 127
    %v385 = vpop.permute.xlu0 %384
    %386 = vrot.lane.b32.xlu0 %v360, 127
    %v387 = vpop.permute.xlu0 %386
    %388 = vrot.lane.b32.xlu0 %v361, 127
    %v389 = vpop.permute.xlu0 %388
    %390 = vrot.lane.b32.xlu0 %v362, 127
    %v391 = vpop.permute.xlu0 %390
    %392 = vrot.lane.b32.xlu0 %v363, 127
    %v393 = vpop.permute.xlu0 %392
    %394 = vrot.lane.b32.xlu0 %v364, 127
    %v395 = vpop.permute.xlu0 %394
    %396 = vrot.lane.b32.xlu0 %v365, 127
    %v397 = vpop.permute.xlu0 %396
    %398 = vrot.lane.b32.xlu0 %v366, 127
    %v399 = vpop.permute.xlu0 %398
    %v411 = vmax.f32 %v356, %v379
    %v412 = vmax.f32 %v357, %v381
    %v413 = vmax.f32 %v358, %v383
    %v414 = vmax.f32 %v359, %v385
    %v415 = vmax.f32 %v360, %v387
    %v416 = vmax.f32 %v361, %v389
    %v417 = vmax.f32 %v362, %v391
    %v418 = vmax.f32 %v363, %v393
    %v419 = vmax.f32 %v364, %v395
    %v420 = vmax.f32 %v365, %v397
    %v421 = vmax.f32 %v366, %v399
    %v422 = vmax.f32 %v411, 0.0
    %v423 = vmax.f32 %v412, 0.0
    %v424 = vmax.f32 %v413, 0.0
    %v425 = vmax.f32 %v414, 0.0
    %v426 = vmax.f32 %v415, 0.0
    %v427 = vmax.f32 %v416, 0.0
    %v428 = vmax.f32 %v417, 0.0
    %v429 = vmax.f32 %v418, 0.0
    %v430 = vmax.f32 %v419, 0.0
    %v431 = vmax.f32 %v420, 0.0
    %v432 = vmax.f32 %v421, 0.0
    %v433 = vpack.c.bf16 %v423, %v422
    %v434 = vpack.c.bf16 %v425, %v424
    %v435 = vpack.c.bf16 %v427, %v426
    %v436 = vpack.c.bf16 %v429, %v428
    %v437 = vpack.c.bf16 %v431, %v430
    %v438 = vpack.c.bf16 %v432, %v432
    %vm445 = vcmask 1043456
    %v446 = vrot.slane %v433, 4
    %v447 = vrot.slane %v434, 4
    %v448 = vsel %vm445, %v446, %v447
    %v449 = vrot.slane %v435, 4
    %v450 = vsel %vm445, %v447, %v449
    %v451 = vrot.slane %v436, 4
    %v452 = vsel %vm445, %v449, %v451
    %v453 = vrot.slane %v437, 4
    %v454 = vsel %vm445, %v451, %v453
    %v455 = vrot.slane %v438, 4
    %v456 = vsel %vm445, %v453, %v455
    %457 = vrot.lane.b32.xlu0 %v446, 126
    %v458 = vpop.permute.xlu0 %457
    %459 = vrot.lane.b32.xlu0 %v448, 126
    %v460 = vpop.permute.xlu0 %459
    %461 = vrot.lane.b32.xlu0 %v450, 126
    %v462 = vpop.permute.xlu0 %461
    %463 = vrot.lane.b32.xlu0 %v452, 126
    %v464 = vpop.permute.xlu0 %463
    %465 = vrot.lane.b32.xlu0 %v454, 126
    %v466 = vpop.permute.xlu0 %465
    %467 = vrot.lane.b32.xlu0 %v456, 126
    %v468 = vpop.permute.xlu0 %467
    %474 = vrot.lane.b32.xlu0 %v433, 124
    %v475 = vpop.permute.xlu0 %474
    %476 = vrot.lane.b32.xlu0 %v434, 124
    %v477 = vpop.permute.xlu0 %476
    %478 = vrot.lane.b32.xlu0 %v435, 124
    %v479 = vpop.permute.xlu0 %478
    %480 = vrot.lane.b32.xlu0 %v436, 124
    %v481 = vpop.permute.xlu0 %480
    %482 = vrot.lane.b32.xlu0 %v437, 124
    %v483 = vpop.permute.xlu0 %482
    %484 = vrot.lane.b32.xlu0 %v438, 124
    %v485 = vpop.permute.xlu0 %484
    %491 = vrot.lane.b32.xlu0 %v446, 122
    %v492 = vpop.permute.xlu0 %491
    %493 = vrot.lane.b32.xlu0 %v448, 122
    %v494 = vpop.permute.xlu0 %493
    %495 = vrot.lane.b32.xlu0 %v450, 122
    %v496 = vpop.permute.xlu0 %495
    %497 = vrot.lane.b32.xlu0 %v452, 122
    %v498 = vpop.permute.xlu0 %497
    %499 = vrot.lane.b32.xlu0 %v454, 122
    %v500 = vpop.permute.xlu0 %499
    %501 = vrot.lane.b32.xlu0 %v456, 122
    %v502 = vpop.permute.xlu0 %501
    %508 = vrot.lane.b32.xlu0 %v433, 120
    %v509 = vpop.permute.xlu0 %508
    %510 = vrot.lane.b32.xlu0 %v434, 120
    %v511 = vpop.permute.xlu0 %510
    %512 = vrot.lane.b32.xlu0 %v435, 120
    %v513 = vpop.permute.xlu0 %512
    %514 = vrot.lane.b32.xlu0 %v436, 120
    %v515 = vpop.permute.xlu0 %514
    %516 = vrot.lane.b32.xlu0 %v437, 120
    %v517 = vpop.permute.xlu0 %516
    %518 = vrot.lane.b32.xlu0 %v438, 120
    %v519 = vpop.permute.xlu0 %518
    %vm525 = vcmask 1043456
    %v528 = vsel %vm525, %v438, %v458
    %v532 = vsel %vm525, %v485, %v492
    %v535 = vsel %vm525, %v519, 1065369472
    %v536 = vld [vmem:[#allocation5 + $0x160] sm:$0xff]
    %v537 = vld [vmem:[#allocation5 + $0x168] sm:$0xff]
    %v538 = vld [vmem:[#allocation5 + $0x170] sm:$0xff]
    %v539 = vld [vmem:[#allocation5 + $0x178] sm:$0xff]
    %v540 = vld [vmem:[#allocation5 + $0x180] sm:$0xff]
    %v541 = vld [vmem:[#allocation5 + $0x188] sm:$0xff]
    %v542 = vld [vmem:[#allocation5 + $0x190] sm:$0xff]
    %v543 = vld [vmem:[#allocation5 + $0x198] sm:$0xff]
    %v544 = vld [vmem:[#allocation5 + $0x1a0] sm:$0xff]
    %v545 = vld [vmem:[#allocation5 + $0x1a8] sm:$0xff]
    %v546 = vld [vmem:[#allocation5 + $0x1b0] sm:$0xff]
    %v547 = vld [vmem:[#allocation5 + $0x1b8] sm:$0xff]
    %v548 = vld [vmem:[#allocation5 + $0x1c0] sm:$0xff]
    %v549 = vld [vmem:[#allocation5 + $0x1c8] sm:$0xff]
    %v550 = vld [vmem:[#allocation5 + $0x1d0] sm:$0xff]
    %v551 = vld [vmem:[#allocation5 + $0x1d8] sm:$0xff]
    %v552 = vld [vmem:[#allocation5 + $0x1e0] sm:$0xff]
    %v553 = vld [vmem:[#allocation5 + $0x1e8] sm:$0xff]
    %v554 = vld [vmem:[#allocation5 + $0x1f0] sm:$0xff]
    %v555 = vld [vmem:[#allocation5 + $0x1f8] sm:$0xff]
    %v556 = vld [vmem:[#allocation5 + $0x200] sm:$0xff]
    %v557 = vld [vmem:[#allocation5 + $0x208] sm:$0xff]
    %v558 = vld [vmem:[#allocation5 + $0x210] sm:$0xff]
    %v559 = vld [vmem:[#allocation5 + $0x218] sm:$0xff]
    %v560 = vld [vmem:[#allocation5 + $0x220] sm:$0xff]
    %v561 = vld [vmem:[#allocation5 + $0x228] sm:$0xff]
    %v562 = vld [vmem:[#allocation5 + $0x230] sm:$0xff]
    %v563 = vld [vmem:[#allocation5 + $0x238] sm:$0xff]
    %v564 = vld [vmem:[#allocation5 + $0x240] sm:$0xff]
    %v565 = vld [vmem:[#allocation5 + $0x248] sm:$0xff]
    %v566 = vld [vmem:[#allocation5 + $0x250] sm:$0xff]
    %v567 = vld [vmem:[#allocation5 + $0x258] sm:$0xff]
    %v568 = vld [vmem:[#allocation5 + $0x260] sm:$0xff]
    %v569 = vld [vmem:[#allocation5 + $0x268] sm:$0xff]
    %v570 = vld [vmem:[#allocation5 + $0x270] sm:$0xff]
    %v571 = vld [vmem:[#allocation5 + $0x278] sm:$0xff]
    %v572 = vld [vmem:[#allocation5 + $0x280] sm:$0xff]
    %v573 = vld [vmem:[#allocation5 + $0x288] sm:$0xff]
    %v574 = vld [vmem:[#allocation5 + $0x290] sm:$0xff]
    %v575 = vld [vmem:[#allocation5 + $0x298] sm:$0xff]
    %v616 = vunpack.c.l.b16 %v536
    %v617 = vunpack.c.h.b16 %v536
    %v618 = vunpack.c.l.b16 %v537
    %v619 = vunpack.c.h.b16 %v537
    %v620 = vunpack.c.l.b16 %v538
    %v621 = vunpack.c.h.b16 %v538
    %v622 = vunpack.c.l.b16 %v539
    %v623 = vunpack.c.h.b16 %v539
    %v624 = vunpack.c.l.b16 %v540
    %v625 = vunpack.c.h.b16 %v540
    %v626 = vunpack.c.l.b16 %v541
    %v627 = vunpack.c.h.b16 %v541
    %v628 = vunpack.c.l.b16 %v542
    %v629 = vunpack.c.h.b16 %v542
    %v630 = vunpack.c.l.b16 %v543
    %v631 = vunpack.c.h.b16 %v543
    %v632 = vunpack.c.l.b16 %v544
    %v633 = vunpack.c.h.b16 %v544
    %v634 = vunpack.c.l.b16 %v545
    %v635 = vunpack.c.h.b16 %v545
    %v636 = vunpack.c.l.b16 %v546
    %v637 = vunpack.c.h.b16 %v546
    %v638 = vunpack.c.l.b16 %v547
    %v639 = vunpack.c.h.b16 %v547
    %v640 = vunpack.c.l.b16 %v548
    %v641 = vunpack.c.h.b16 %v548
    %v642 = vunpack.c.l.b16 %v549
    %v643 = vunpack.c.h.b16 %v549
    %v644 = vunpack.c.l.b16 %v550
    %v645 = vunpack.c.h.b16 %v550
    %v646 = vunpack.c.l.b16 %v551
    %v647 = vunpack.c.h.b16 %v551
    %v648 = vunpack.c.l.b16 %v552
    %v649 = vunpack.c.h.b16 %v552
    %v650 = vunpack.c.l.b16 %v553
    %v651 = vunpack.c.h.b16 %v553
    %v652 = vunpack.c.l.b16 %v554
    %v653 = vunpack.c.h.b16 %v554
    %v654 = vunpack.c.l.b16 %v555
    %v655 = vunpack.c.h.b16 %v555
    %v656 = vunpack.c.l.b16 %v556
    %v657 = vunpack.c.h.b16 %v556
    %v658 = vunpack.c.l.b16 %v557
    %v659 = vunpack.c.h.b16 %v557
    %v660 = vunpack.c.l.b16 %v558
    %v661 = vunpack.c.h.b16 %v558
    %v662 = vunpack.c.l.b16 %v559
    %v663 = vunpack.c.h.b16 %v559
    %v664 = vunpack.c.l.b16 %v560
    %v665 = vunpack.c.h.b16 %v560
    %v666 = vunpack.c.l.b16 %v561
    %v667 = vunpack.c.h.b16 %v561
    %v668 = vunpack.c.l.b16 %v562
    %v669 = vunpack.c.h.b16 %v562
    %v670 = vunpack.c.l.b16 %v563
    %v671 = vunpack.c.h.b16 %v563
    %v672 = vunpack.c.l.b16 %v564
    %v673 = vunpack.c.h.b16 %v564
    %v674 = vunpack.c.l.b16 %v565
    %v675 = vunpack.c.h.b16 %v565
    %v676 = vunpack.c.l.b16 %v566
    %v677 = vunpack.c.h.b16 %v566
    %v678 = vunpack.c.l.b16 %v567
    %v679 = vunpack.c.h.b16 %v567
    %v680 = vunpack.c.l.b16 %v568
    %v681 = vunpack.c.h.b16 %v568
    %v682 = vunpack.c.l.b16 %v569
    %v683 = vunpack.c.h.b16 %v569
    %v684 = vunpack.c.l.b16 %v570
    %v685 = vunpack.c.h.b16 %v570
    %v686 = vunpack.c.l.b16 %v571
    %v687 = vunpack.c.h.b16 %v571
    %v688 = vunpack.c.l.b16 %v572
    %v689 = vunpack.c.h.b16 %v572
    %v690 = vunpack.c.l.b16 %v573
    %v691 = vunpack.c.h.b16 %v573
    %v692 = vunpack.c.l.b16 %v574
    %v693 = vunpack.c.h.b16 %v574
    %v694 = vunpack.c.l.b16 %v575
    %v695 = vunpack.c.h.b16 %v575
    %v696 = vpack.c.b16 %v620, %v616
    %v697 = vpack.c.b16 %v621, %v617
    %v698 = vpack.c.b16 %v622, %v618
    %v699 = vpack.c.b16 %v623, %v619
    %v700 = vpack.c.b16 %v628, %v624
    %v701 = vpack.c.b16 %v629, %v625
    %v702 = vpack.c.b16 %v630, %v626
    %v703 = vpack.c.b16 %v631, %v627
    %v704 = vpack.c.b16 %v636, %v632
    %v705 = vpack.c.b16 %v637, %v633
    %v706 = vpack.c.b16 %v638, %v634
    %v707 = vpack.c.b16 %v639, %v635
    %v708 = vpack.c.b16 %v644, %v640
    %v709 = vpack.c.b16 %v645, %v641
    %v710 = vpack.c.b16 %v646, %v642
    %v711 = vpack.c.b16 %v647, %v643
    %v712 = vpack.c.b16 %v652, %v648
    %v713 = vpack.c.b16 %v653, %v649
    %v714 = vpack.c.b16 %v654, %v650
    %v715 = vpack.c.b16 %v655, %v651
    %v716 = vpack.c.b16 %v660, %v656
    %v717 = vpack.c.b16 %v661, %v657
    %v718 = vpack.c.b16 %v662, %v658
    %v719 = vpack.c.b16 %v663, %v659
    %v720 = vpack.c.b16 %v668, %v664
    %v721 = vpack.c.b16 %v669, %v665
    %v722 = vpack.c.b16 %v670, %v666
    %v723 = vpack.c.b16 %v671, %v667
    %v724 = vpack.c.b16 %v676, %v672
    %v725 = vpack.c.b16 %v677, %v673
    %v726 = vpack.c.b16 %v678, %v674
    %v727 = vpack.c.b16 %v679, %v675
    %v728 = vpack.c.b16 %v684, %v680
    %v729 = vpack.c.b16 %v685, %v681
    %v730 = vpack.c.b16 %v686, %v682
    %v731 = vpack.c.b16 %v687, %v683
    %v732 = vpack.c.b16 %v692, %v688
    %v733 = vpack.c.b16 %v693, %v689
    %v734 = vpack.c.b16 %v694, %v690
    %v735 = vpack.c.b16 %v695, %v691
    %vm766 = vcmask 465920
    %v768 = vsel %vm766, %v699, 0
    %v771 = vsel %vm766, %v703, 0
    %v774 = vsel %vm766, %v707, 0
    %v777 = vsel %vm766, %v711, 0
    %v780 = vsel %vm766, %v715, 0
    %v783 = vsel %vm766, %v719, 0
    %v786 = vsel %vm766, %v723, 0
    %v789 = vsel %vm766, %v727, 0
    %v792 = vsel %vm766, %v731, 0
    %v795 = vsel %vm766, %v735, 0
    %vm797 = vcmask 1044480
    %v798 = vsel %vm525, 4294967295, 65535
    %v799 = vsel %vm797, %v798, 0
    %v800 = vand.u32 %v535, %v799
    %802 = vmatprep.subr.bf16.mxu0 0
    %803 = vmatpush1.bf16.msra.mxu0 %v433
    %804 = vmatprep.subr.bf16.mxu0 0
    %805 = vmatpush1.bf16.msra.mxu0 %v434
    %806 = vmatprep.subr.bf16.mxu0 0
    %807 = vmatpush1.bf16.msra.mxu0 %v435
    %808 = vmatprep.subr.bf16.mxu0 0
    %809 = vmatpush1.bf16.msra.mxu0 %v436
    %810 = vmatprep.subr.bf16.mxu0 0
    %811 = vmatpush1.bf16.msra.mxu0 %v437
    %812 = vmatprep.subr.bf16.mxu0 0
    %813 = vmatpush1.bf16.msra.mxu0 %v528
    %814 = vmatprep.subr.bf16.mxu0 0
    %815 = vmatpush1.bf16.msra.mxu0 %v460
    %816 = vmatprep.subr.bf16.mxu0 0
    %817 = vmatpush1.bf16.msra.mxu0 %v462
    %818 = vmatprep.subr.bf16.mxu0 0
    %819 = vmatpush1.bf16.msra.mxu0 %v464
    %820 = vmatprep.subr.bf16.mxu0 0
    %821 = vmatpush1.bf16.msra.mxu0 %v466
    %822 = vmatprep.subr.bf16.mxu0 0
    %823 = vmatpush1.bf16.msra.mxu0 %v468
    %824 = vmatprep.subr.bf16.mxu0 0
    %825 = vmatpush1.bf16.msra.mxu0 %v475
    %826 = vmatprep.subr.bf16.mxu0 0
    %827 = vmatpush1.bf16.msra.mxu0 %v477
    %828 = vmatprep.subr.bf16.mxu0 0
    %829 = vmatpush1.bf16.msra.mxu0 %v479
    %830 = vmatprep.subr.bf16.mxu0 0
    %831 = vmatpush1.bf16.msra.mxu0 %v481
    %832 = vmatprep.subr.bf16.mxu0 0
    %833 = vmatpush1.bf16.msra.mxu0 %v483
    %834 = vmatprep.mubr.bf16.mxu0 %v697
    %835 = vmatmul.mubr.bf16.gmra.mrb[0].mxu0 %v696
    %v836 = vpop.f32.mrb[0].mxu0
    %v837 = vadd.f32 0.0, %v836
    %v838 = vpop.f32.mrb[0].mxu0
    %v839 = vpop.f32.mrb[0].mxu0
    %v840 = vadd.f32 0.0, %v839
    %v841 = vpop.f32.mrb[0].mxu0
    %842 = vmatprep.mubr.bf16.mxu0 %v701
    %843 = vmatmul.mubr.bf16.gmra.mrb[0].mxu0 %v700
    %v844 = vpop.f32.mrb[0].mxu0
    %v845 = vadd.f32 0.0, %v844
    %v846 = vpop.f32.mrb[0].mxu0
    %v847 = vpop.f32.mrb[0].mxu0
    %v848 = vadd.f32 0.0, %v847
    %v849 = vpop.f32.mrb[0].mxu0
    %850 = vmatprep.mubr.bf16.mxu0 %v705
    %851 = vmatmul.mubr.bf16.gmra.mrb[0].mxu0 %v704
    %v852 = vpop.f32.mrb[0].mxu0
    %v853 = vadd.f32 0.0, %v852
    %v854 = vpop.f32.mrb[0].mxu0
    %v855 = vpop.f32.mrb[0].mxu0
    %v856 = vadd.f32 0.0, %v855
    %v857 = vpop.f32.mrb[0].mxu0
    %858 = vmatprep.mubr.bf16.mxu0 %v709
    %859 = vmatmul.mubr.bf16.gmra.mrb[0].mxu0 %v708
    %v860 = vpop.f32.mrb[0].mxu0
    %v861 = vadd.f32 0.0, %v860
    %v862 = vpop.f32.mrb[0].mxu0
    %v863 = vpop.f32.mrb[0].mxu0
    %v864 = vadd.f32 0.0, %v863
    %v865 = vpop.f32.mrb[0].mxu0
    %866 = vmatprep.mubr.bf16.mxu0 %v713
    %867 = vmatmul.mubr.bf16.gmra.mrb[0].mxu0 %v712
    %v868 = vpop.f32.mrb[0].mxu0
    %v869 = vadd.f32 0.0, %v868
    %v870 = vpop.f32.mrb[0].mxu0
    %v871 = vpop.f32.mrb[0].mxu0
    %v872 = vadd.f32 0.0, %v871
    %v873 = vpop.f32.mrb[0].mxu0
    %874 = vmatprep.mubr.bf16.mxu0 %v717
    %875 = vmatmul.mubr.bf16.gmra.mrb[0].mxu0 %v716
    %v876 = vpop.f32.mrb[0].mxu0
    %v877 = vadd.f32 0.0, %v876
    %v878 = vpop.f32.mrb[0].mxu0
    %v879 = vpop.f32.mrb[0].mxu0
    %v880 = vadd.f32 0.0, %v879
    %v881 = vpop.f32.mrb[0].mxu0
    %882 = vmatprep.mubr.bf16.mxu0 %v721
    %883 = vmatmul.mubr.bf16.gmra.mrb[0].mxu0 %v720
    %v884 = vpop.f32.mrb[0].mxu0
    %v885 = vadd.f32 0.0, %v884
    %v886 = vpop.f32.mrb[0].mxu0
    %v887 = vpop.f32.mrb[0].mxu0
    %v888 = vadd.f32 0.0, %v887
    %v889 = vpop.f32.mrb[0].mxu0
    %890 = vmatprep.mubr.bf16.mxu0 %v725
    %891 = vmatmul.mubr.bf16.gmra.mrb[0].mxu0 %v724
    %v892 = vpop.f32.mrb[0].mxu0
    %v893 = vadd.f32 0.0, %v892
    %v894 = vpop.f32.mrb[0].mxu0
    %v895 = vpop.f32.mrb[0].mxu0
    %v896 = vadd.f32 0.0, %v895
    %v897 = vpop.f32.mrb[0].mxu0
    %898 = vmatprep.mubr.bf16.mxu0 %v729
    %899 = vmatmul.mubr.bf16.gmra.mrb[0].mxu0 %v728
    %v900 = vpop.f32.mrb[0].mxu0
    %v901 = vadd.f32 0.0, %v900
    %v902 = vpop.f32.mrb[0].mxu0
    %v903 = vpop.f32.mrb[0].mxu0
    %v904 = vadd.f32 0.0, %v903
    %v905 = vpop.f32.mrb[0].mxu0
    %906 = vmatprep.mubr.bf16.mxu0 %v733
    %907 = vmatmul.mubr.bf16.gmra.mrb[0].mxu0 %v732
    %v908 = vpop.f32.mrb[0].mxu0
    %v909 = vadd.f32 0.0, %v908
    %v910 = vpop.f32.mrb[0].mxu0
    %v911 = vpop.f32.mrb[0].mxu0
    %v912 = vadd.f32 0.0, %v911
    %v913 = vpop.f32.mrb[0].mxu0
    %914 = vdwg.mxu0
    %915 = vmatprep.subr.bf16.mxu0 0
    %916 = vmatpush1.bf16.msra.mxu0 %v532
    %917 = vmatprep.subr.bf16.mxu0 0
    %918 = vmatpush1.bf16.msra.mxu0 %v494
    %919 = vmatprep.subr.bf16.mxu0 0
    %920 = vmatpush1.bf16.msra.mxu0 %v496
    %921 = vmatprep.subr.bf16.mxu0 0
    %922 = vmatpush1.bf16.msra.mxu0 %v498
    %923 = vmatprep.subr.bf16.mxu0 0
    %924 = vmatpush1.bf16.msra.mxu0 %v500
    %925 = vmatprep.subr.bf16.mxu0 0
    %926 = vmatpush1.bf16.msra.mxu0 %v502
    %927 = vmatprep.subr.bf16.mxu0 0
    %928 = vmatpush1.bf16.msra.mxu0 %v509
    %929 = vmatprep.subr.bf16.mxu0 0
    %930 = vmatpush1.bf16.msra.mxu0 %v511
    %931 = vmatprep.subr.bf16.mxu0 0
    %932 = vmatpush1.bf16.msra.mxu0 %v513
    %933 = vmatprep.subr.bf16.mxu0 0
    %934 = vmatpush1.bf16.msra.mxu0 %v515
    %935 = vmatprep.subr.bf16.mxu0 0
    %936 = vmatpush1.bf16.msra.mxu0 %v517
    %937 = vmatprep.subr.bf16.mxu0 0
    %938 = vmatpush1.bf16.msra.mxu0 %v800
    %939 = vmatprep.subr.bf16.mxu0 0
    %940 = vmatpush1.bf16.msra.mxu0 0
    %941 = vmatprep.subr.bf16.mxu0 0
    %942 = vmatpush1.bf16.msra.mxu0 0
    %943 = vmatprep.subr.bf16.mxu0 0
    %944 = vmatpush1.bf16.msra.mxu0 0
    %945 = vmatprep.subr.bf16.mxu0 0
    %946 = vmatpush1.bf16.msra.mxu0 0
    %947 = vmatprep.mubr.bf16.mxu0 %v768
    %948 = vmatmul.mubr.bf16.gmra.mrb[0].mxu0 %v698
    %v949 = vpop.f32.mrb[0].mxu0
    %v950 = vadd.f32 %v837, %v949
    %v951 = vpop.f32.mrb[0].mxu0
    %v952 = vpop.f32.mrb[0].mxu0
    %v953 = vadd.f32 %v840, %v952
    %v954 = vpop.f32.mrb[0].mxu0
    %955 = vmatprep.mubr.bf16.mxu0 %v771
    %956 = vmatmul.mubr.bf16.gmra.mrb[0].mxu0 %v702
    %v957 = vpop.f32.mrb[0].mxu0
    %v958 = vadd.f32 %v845, %v957
    %v959 = vpop.f32.mrb[0].mxu0
    %v960 = vpop.f32.mrb[0].mxu0
    %v961 = vadd.f32 %v848, %v960
    %v962 = vpop.f32.mrb[0].mxu0
    %963 = vmatprep.mubr.bf16.mxu0 %v774
    %964 = vmatmul.mubr.bf16.gmra.mrb[0].mxu0 %v706
    %v965 = vpop.f32.mrb[0].mxu0
    %v966 = vadd.f32 %v853, %v965
    %v967 = vpop.f32.mrb[0].mxu0
    %v968 = vpop.f32.mrb[0].mxu0
    %v969 = vadd.f32 %v856, %v968
    %v970 = vpop.f32.mrb[0].mxu0
    %971 = vmatprep.mubr.bf16.mxu0 %v777
    %972 = vmatmul.mubr.bf16.gmra.mrb[0].mxu0 %v710
    %v973 = vpop.f32.mrb[0].mxu0
    %v974 = vadd.f32 %v861, %v973
    %v975 = vpop.f32.mrb[0].mxu0
    %v976 = vpop.f32.mrb[0].mxu0
    %v977 = vadd.f32 %v864, %v976
    %v978 = vpop.f32.mrb[0].mxu0
    %979 = vmatprep.mubr.bf16.mxu0 %v780
    %980 = vmatmul.mubr.bf16.gmra.mrb[0].mxu0 %v714
    %v981 = vpop.f32.mrb[0].mxu0
    %v982 = vadd.f32 %v869, %v981
    %v983 = vpop.f32.mrb[0].mxu0
    %v984 = vpop.f32.mrb[0].mxu0
    %v985 = vadd.f32 %v872, %v984
    %v986 = vpop.f32.mrb[0].mxu0
    %987 = vmatprep.mubr.bf16.mxu0 %v783
    %988 = vmatmul.mubr.bf16.gmra.mrb[0].mxu0 %v718
    %v989 = vpop.f32.mrb[0].mxu0
    %v990 = vadd.f32 %v877, %v989
    %v991 = vpop.f32.mrb[0].mxu0
    %v992 = vpop.f32.mrb[0].mxu0
    %v993 = vadd.f32 %v880, %v992
    %v994 = vpop.f32.mrb[0].mxu0
    %995 = vmatprep.mubr.bf16.mxu0 %v786
    %996 = vmatmul.mubr.bf16.gmra.mrb[0].mxu0 %v722
    %v997 = vpop.f32.mrb[0].mxu0
    %v998 = vadd.f32 %v885, %v997
    %v999 = vpop.f32.mrb[0].mxu0
    %v1000 = vpop.f32.mrb[0].mxu0
    %v1001 = vadd.f32 %v888, %v1000
    %v1002 = vpop.f32.mrb[0].mxu0
    %1003 = vmatprep.mubr.bf16.mxu0 %v789
    %1004 = vmatmul.mubr.bf16.gmra.mrb[0].mxu0 %v726
    %v1005 = vpop.f32.mrb[0].mxu0
    %v1006 = vadd.f32 %v893, %v1005
    %v1007 = vpop.f32.mrb[0].mxu0
    %v1008 = vpop.f32.mrb[0].mxu0
    %v1009 = vadd.f32 %v896, %v1008
    %v1010 = vpop.f32.mrb[0].mxu0
    %1011 = vmatprep.mubr.bf16.mxu0 %v792
    %1012 = vmatmul.mubr.bf16.gmra.mrb[0].mxu0 %v730
    %v1013 = vpop.f32.mrb[0].mxu0
    %v1014 = vadd.f32 %v901, %v1013
    %v1015 = vpop.f32.mrb[0].mxu0
    %v1016 = vpop.f32.mrb[0].mxu0
    %v1017 = vadd.f32 %v904, %v1016
    %v1018 = vpop.f32.mrb[0].mxu0
    %1019 = vmatprep.mubr.bf16.mxu0 %v795
    %1020 = vmatmul.mubr.bf16.gmra.mrb[0].mxu0 %v734
    %v1021 = vpop.f32.mrb[0].mxu0
    %v1022 = vadd.f32 %v909, %v1021
    %v1023 = vpop.f32.mrb[0].mxu0
    %v1024 = vpop.f32.mrb[0].mxu0
    %v1025 = vadd.f32 %v912, %v1024
    %v1026 = vpop.f32.mrb[0].mxu0
    %1027 = vdwg.mxu0
    %v1028 = vmax.f32 %v950, %v990
    %v1029 = vmax.f32 %v953, %v993
    %v1030 = vmax.f32 %v958, %v998
    %v1031 = vmax.f32 %v961, %v1001
    %v1032 = vmax.f32 %v966, %v1006
    %v1033 = vmax.f32 %v969, %v1009
    %v1034 = vmax.f32 %v974, %v1014
    %v1035 = vmax.f32 %v977, %v1017
    %v1036 = vmax.f32 %v982, %v1022
    %v1037 = vmax.f32 %v985, %v1025
    %1048 = vrot.lane.b32.xlu0 %v1028, 126
    %v1049 = vpop.permute.xlu0 %1048
    %1050 = vrot.lane.b32.xlu0 %v1029, 126
    %v1051 = vpop.permute.xlu0 %1050
    %1052 = vrot.lane.b32.xlu0 %v1030, 126
    %v1053 = vpop.permute.xlu0 %1052
    %1054 = vrot.lane.b32.xlu0 %v1031, 126
    %v1055 = vpop.permute.xlu0 %1054
    %1056 = vrot.lane.b32.xlu0 %v1032, 126
    %v1057 = vpop.permute.xlu0 %1056
    %1058 = vrot.lane.b32.xlu0 %v1033, 126
    %v1059 = vpop.permute.xlu0 %1058
    %1060 = vrot.lane.b32.xlu0 %v1034, 126
    %v1061 = vpop.permute.xlu0 %1060
    %1062 = vrot.lane.b32.xlu0 %v1035, 126
    %v1063 = vpop.permute.xlu0 %1062
    %1064 = vrot.lane.b32.xlu0 %v1036, 126
    %v1065 = vpop.permute.xlu0 %1064
    %1066 = vrot.lane.b32.xlu0 %v1037, 126
    %v1067 = vpop.permute.xlu0 %1066
    %v1078 = vmax.f32 %v1028, %v1049
    %v1079 = vmax.f32 %v1029, %v1051
    %v1080 = vmax.f32 %v1030, %v1053
    %v1081 = vmax.f32 %v1031, %v1055
    %v1082 = vmax.f32 %v1032, %v1057
    %v1083 = vmax.f32 %v1033, %v1059
    %v1084 = vmax.f32 %v1034, %v1061
    %v1085 = vmax.f32 %v1035, %v1063
    %v1086 = vmax.f32 %v1036, %v1065
    %v1087 = vmax.f32 %v1037, %v1067
    %v1088 = vmax.f32 %v1078, 0.0
    %v1089 = vmax.f32 %v1079, 0.0
    %v1090 = vmax.f32 %v1080, 0.0
    %v1091 = vmax.f32 %v1081, 0.0
    %v1092 = vmax.f32 %v1082, 0.0
    %v1093 = vmax.f32 %v1083, 0.0
    %v1094 = vmax.f32 %v1084, 0.0
    %v1095 = vmax.f32 %v1085, 0.0
    %v1096 = vmax.f32 %v1086, 0.0
    %v1097 = vmax.f32 %v1087, 0.0
    %v1098 = vld [vmem:[#allocation5 + $0x2a0] sm:$0xf]
    %v1099 = vld [vmem:[#allocation5 + $0x2b0] sm:$0xf]
    %v1100 = vld [vmem:[#allocation5 + $0x2c0] sm:$0xf]
    %v1101 = vld [vmem:[#allocation5 + $0x2d0] sm:$0xf]
    %v1102 = vld [vmem:[#allocation5 + $0x2e0] sm:$0xf]
    %v1103 = vld [vmem:[#allocation5 + $0x2f0] sm:$0xf]
    %v1104 = vld [vmem:[#allocation5 + $0x300] sm:$0xf]
    %v1105 = vld [vmem:[#allocation5 + $0x310] sm:$0xf]
    %v1106 = vld [vmem:[#allocation5 + $0x320] sm:$0xf]
    %v1107 = vld [vmem:[#allocation5 + $0x330] sm:$0xf]
    %v1108 = vunpack.c.l.bf16 %v1098
    %v1109 = vunpack.c.l.bf16 %v1099
    %v1110 = vunpack.c.l.bf16 %v1100
    %v1111 = vunpack.c.l.bf16 %v1101
    %v1112 = vunpack.c.l.bf16 %v1102
    %v1113 = vunpack.c.l.bf16 %v1103
    %v1114 = vunpack.c.l.bf16 %v1104
    %v1115 = vunpack.c.l.bf16 %v1105
    %v1116 = vunpack.c.l.bf16 %v1106
    %v1117 = vunpack.c.l.bf16 %v1107
    %1119 = vset.pattern.permute.xlu0 0
    %1120 = vperm.xlu0 %1119, %v1088
    %v1121 = vpop.permute.xlu0 %1120
    %1124 = vset.pattern.permute.xlu0 0
    %1125 = vperm.xlu0 %1124, %v1089
    %v1126 = vpop.permute.xlu0 %1125
    %1129 = vset.pattern.permute.xlu0 0
    %1130 = vperm.xlu0 %1129, %v1090
    %v1131 = vpop.permute.xlu0 %1130
    %1134 = vset.pattern.permute.xlu0 0
    %1135 = vperm.xlu0 %1134, %v1091
    %v1136 = vpop.permute.xlu0 %1135
    %1139 = vset.pattern.permute.xlu0 0
    %1140 = vperm.xlu0 %1139, %v1092
    %v1141 = vpop.permute.xlu0 %1140
    %1144 = vset.pattern.permute.xlu0 0
    %1145 = vperm.xlu0 %1144, %v1093
    %v1146 = vpop.permute.xlu0 %1145
    %1149 = vset.pattern.permute.xlu0 0
    %1150 = vperm.xlu0 %1149, %v1094
    %v1151 = vpop.permute.xlu0 %1150
    %1154 = vset.pattern.permute.xlu0 0
    %1155 = vperm.xlu0 %1154, %v1095
    %v1156 = vpop.permute.xlu0 %1155
    %1159 = vset.pattern.permute.xlu0 0
    %1160 = vperm.xlu0 %1159, %v1096
    %v1161 = vpop.permute.xlu0 %1160
    %1164 = vset.pattern.permute.xlu0 0
    %1165 = vperm.xlu0 %1164, %v1097
    %v1166 = vpop.permute.xlu0 %1165
    %v1168 = vmul.f32 %v1121, %v1108
    %v1169 = vmul.f32 %v1126, %v1109
    %v1170 = vmul.f32 %v1131, %v1110
    %v1171 = vmul.f32 %v1136, %v1111
    %v1172 = vmul.f32 %v1141, %v1112
    %v1173 = vmul.f32 %v1146, %v1113
    %v1174 = vmul.f32 %v1151, %v1114
    %v1175 = vmul.f32 %v1156, %v1115
    %v1176 = vmul.f32 %v1161, %v1116
    %v1177 = vmul.f32 %v1166, %v1117
    %v1178 = vld [vmem:[#allocation5 + $0x340] sm:$0xf]
    %v1179 = vld [vmem:[#allocation5 + $0x350] sm:$0xf]
    %v1180 = vld [vmem:[#allocation5 + $0x360] sm:$0xf]
    %v1181 = vld [vmem:[#allocation5 + $0x370] sm:$0xf]
    %v1182 = vld [vmem:[#allocation5 + $0x380] sm:$0xf]
    %v1183 = vld [vmem:[#allocation5 + $0x390] sm:$0xf]
    %v1184 = vld [vmem:[#allocation5 + $0x3a0] sm:$0xf]
    %v1185 = vld [vmem:[#allocation5 + $0x3b0] sm:$0xf]
    %v1186 = vld [vmem:[#allocation5 + $0x3c0] sm:$0xf]
    %v1187 = vld [vmem:[#allocation5 + $0x3d0] sm:$0xf]
    %v1188 = vunpack.c.l.bf16 %v1178
    %v1189 = vunpack.c.l.bf16 %v1179
    %v1190 = vunpack.c.l.bf16 %v1180
    %v1191 = vunpack.c.l.bf16 %v1181
    %v1192 = vunpack.c.l.bf16 %v1182
    %v1193 = vunpack.c.l.bf16 %v1183
    %v1194 = vunpack.c.l.bf16 %v1184
    %v1195 = vunpack.c.l.bf16 %v1185
    %v1196 = vunpack.c.l.bf16 %v1186
    %v1197 = vunpack.c.l.bf16 %v1187
    %1198 = vset.pattern.permute.xlu0 4
    %1199 = vperm.xlu0 %1198, %v1088
    %v1200 = vpop.permute.xlu0 %1199
    %1202 = vset.pattern.permute.xlu0 4
    %1203 = vperm.xlu0 %1202, %v1089
    %v1204 = vpop.permute.xlu0 %1203
    %1206 = vset.pattern.permute.xlu0 4
    %1207 = vperm.xlu0 %1206, %v1090
    %v1208 = vpop.permute.xlu0 %1207
    %1210 = vset.pattern.permute.xlu0 4
    %1211 = vperm.xlu0 %1210, %v1091
    %v1212 = vpop.permute.xlu0 %1211
    %1214 = vset.pattern.permute.xlu0 4
    %1215 = vperm.xlu0 %1214, %v1092
    %v1216 = vpop.permute.xlu0 %1215
    %1218 = vset.pattern.permute.xlu0 4
    %1219 = vperm.xlu0 %1218, %v1093
    %v1220 = vpop.permute.xlu0 %1219
    %1222 = vset.pattern.permute.xlu0 4
    %1223 = vperm.xlu0 %1222, %v1094
    %v1224 = vpop.permute.xlu0 %1223
    %1226 = vset.pattern.permute.xlu0 4
    %1227 = vperm.xlu0 %1226, %v1095
    %v1228 = vpop.permute.xlu0 %1227
    %1230 = vset.pattern.permute.xlu0 4
    %1231 = vperm.xlu0 %1230, %v1096
    %v1232 = vpop.permute.xlu0 %1231
    %1234 = vset.pattern.permute.xlu0 4
    %1235 = vperm.xlu0 %1234, %v1097
    %v1236 = vpop.permute.xlu0 %1235
    %v1238 = vmul.f32 %v1200, %v1188
    %v1239 = vmul.f32 %v1204, %v1189
    %v1240 = vmul.f32 %v1208, %v1190
    %v1241 = vmul.f32 %v1212, %v1191
    %v1242 = vmul.f32 %v1216, %v1192
    %v1243 = vmul.f32 %v1220, %v1193
    %v1244 = vmul.f32 %v1224, %v1194
    %v1245 = vmul.f32 %v1228, %v1195
    %v1246 = vmul.f32 %v1232, %v1196
    %v1247 = vmul.f32 %v1236, %v1197
    %v1248 = vadd.f32 %v1168, %v1238
    %v1249 = vadd.f32 %v1169, %v1239
    %v1250 = vadd.f32 %v1170, %v1240
    %v1251 = vadd.f32 %v1171, %v1241
    %v1252 = vadd.f32 %v1172, %v1242
    %v1253 = vadd.f32 %v1173, %v1243
    %v1254 = vadd.f32 %v1174, %v1244
    %v1255 = vadd.f32 %v1175, %v1245
    %v1256 = vadd.f32 %v1176, %v1246
    %v1257 = vadd.f32 %v1177, %v1247
    %v1258 = vld [vmem:[#allocation5 + $0x3e0] sm:$0xf]
    %v1259 = vld [vmem:[#allocation5 + $0x3f0] sm:$0xf]
    %v1260 = vld [vmem:[#allocation5 + $0x400] sm:$0xf]
    %v1261 = vld [vmem:[#allocation5 + $0x410] sm:$0xf]
    %v1262 = vld [vmem:[#allocation5 + $0x420] sm:$0xf]
    %v1263 = vld [vmem:[#allocation5 + $0x430] sm:$0xf]
    %v1264 = vld [vmem:[#allocation5 + $0x440] sm:$0xf]
    %v1265 = vld [vmem:[#allocation5 + $0x450] sm:$0xf]
    %v1266 = vld [vmem:[#allocation5 + $0x460] sm:$0xf]
    %v1267 = vld [vmem:[#allocation5 + $0x470] sm:$0xf]
    %v1268 = vunpack.c.l.bf16 %v1258
    %v1269 = vunpack.c.l.bf16 %v1259
    %v1270 = vunpack.c.l.bf16 %v1260
    %v1271 = vunpack.c.l.bf16 %v1261
    %v1272 = vunpack.c.l.bf16 %v1262
    %v1273 = vunpack.c.l.bf16 %v1263
    %v1274 = vunpack.c.l.bf16 %v1264
    %v1275 = vunpack.c.l.bf16 %v1265
    %v1276 = vunpack.c.l.bf16 %v1266
    %v1277 = vunpack.c.l.bf16 %v1267
    %1278 = vset.pattern.permute.xlu0 8
    %1279 = vperm.xlu0 %1278, %v1088
    %v1280 = vpop.permute.xlu0 %1279
    %1282 = vset.pattern.permute.xlu0 8
    %1283 = vperm.xlu0 %1282, %v1089
    %v1284 = vpop.permute.xlu0 %1283
    %1286 = vset.pattern.permute.xlu0 8
    %1287 = vperm.xlu0 %1286, %v1090
    %v1288 = vpop.permute.xlu0 %1287
    %1290 = vset.pattern.permute.xlu0 8
    %1291 = vperm.xlu0 %1290, %v1091
    %v1292 = vpop.permute.xlu0 %1291
    %1294 = vset.pattern.permute.xlu0 8
    %1295 = vperm.xlu0 %1294, %v1092
    %v1296 = vpop.permute.xlu0 %1295
    %1298 = vset.pattern.permute.xlu0 8
    %1299 = vperm.xlu0 %1298, %v1093
    %v1300 = vpop.permute.xlu0 %1299
    %1302 = vset.pattern.permute.xlu0 8
    %1303 = vperm.xlu0 %1302, %v1094
    %v1304 = vpop.permute.xlu0 %1303
    %1306 = vset.pattern.permute.xlu0 8
    %1307 = vperm.xlu0 %1306, %v1095
    %v1308 = vpop.permute.xlu0 %1307
    %1310 = vset.pattern.permute.xlu0 8
    %1311 = vperm.xlu0 %1310, %v1096
    %v1312 = vpop.permute.xlu0 %1311
    %1314 = vset.pattern.permute.xlu0 8
    %1315 = vperm.xlu0 %1314, %v1097
    %v1316 = vpop.permute.xlu0 %1315
    %v1318 = vmul.f32 %v1280, %v1268
    %v1319 = vmul.f32 %v1284, %v1269
    %v1320 = vmul.f32 %v1288, %v1270
    %v1321 = vmul.f32 %v1292, %v1271
    %v1322 = vmul.f32 %v1296, %v1272
    %v1323 = vmul.f32 %v1300, %v1273
    %v1324 = vmul.f32 %v1304, %v1274
    %v1325 = vmul.f32 %v1308, %v1275
    %v1326 = vmul.f32 %v1312, %v1276
    %v1327 = vmul.f32 %v1316, %v1277
    %v1328 = vadd.f32 %v1248, %v1318
    %v1329 = vadd.f32 %v1249, %v1319
    %v1330 = vadd.f32 %v1250, %v1320
    %v1331 = vadd.f32 %v1251, %v1321
    %v1332 = vadd.f32 %v1252, %v1322
    %v1333 = vadd.f32 %v1253, %v1323
    %v1334 = vadd.f32 %v1254, %v1324
    %v1335 = vadd.f32 %v1255, %v1325
    %v1336 = vadd.f32 %v1256, %v1326
    %v1337 = vadd.f32 %v1257, %v1327
    %v1338 = vld [vmem:[#allocation5 + $0x480] sm:$0xf]
    %v1339 = vld [vmem:[#allocation5 + $0x490] sm:$0xf]
    %v1340 = vld [vmem:[#allocation5 + $0x4a0] sm:$0xf]
    %v1341 = vld [vmem:[#allocation5 + $0x4b0] sm:$0xf]
    %v1342 = vld [vmem:[#allocation5 + $0x4c0] sm:$0xf]
    %v1343 = vld [vmem:[#allocation5 + $0x4d0] sm:$0xf]
    %v1344 = vld [vmem:[#allocation5 + $0x4e0] sm:$0xf]
    %v1345 = vld [vmem:[#allocation5 + $0x4f0] sm:$0xf]
    %v1346 = vld [vmem:[#allocation5 + $0x500] sm:$0xf]
    %v1347 = vld [vmem:[#allocation5 + $0x510] sm:$0xf]
    %v1348 = vunpack.c.l.bf16 %v1338
    %v1349 = vunpack.c.l.bf16 %v1339
    %v1350 = vunpack.c.l.bf16 %v1340
    %v1351 = vunpack.c.l.bf16 %v1341
    %v1352 = vunpack.c.l.bf16 %v1342
    %v1353 = vunpack.c.l.bf16 %v1343
    %v1354 = vunpack.c.l.bf16 %v1344
    %v1355 = vunpack.c.l.bf16 %v1345
    %v1356 = vunpack.c.l.bf16 %v1346
    %v1357 = vunpack.c.l.bf16 %v1347
    %1358 = vset.pattern.permute.xlu0 12
    %1359 = vperm.xlu0 %1358, %v1088
    %v1360 = vpop.permute.xlu0 %1359
    %1362 = vset.pattern.permute.xlu0 12
    %1363 = vperm.xlu0 %1362, %v1089
    %v1364 = vpop.permute.xlu0 %1363
    %1366 = vset.pattern.permute.xlu0 12
    %1367 = vperm.xlu0 %1366, %v1090
    %v1368 = vpop.permute.xlu0 %1367
    %1370 = vset.pattern.permute.xlu0 12
    %1371 = vperm.xlu0 %1370, %v1091
    %v1372 = vpop.permute.xlu0 %1371
    %1374 = vset.pattern.permute.xlu0 12
    %1375 = vperm.xlu0 %1374, %v1092
    %v1376 = vpop.permute.xlu0 %1375
    %1378 = vset.pattern.permute.xlu0 12
    %1379 = vperm.xlu0 %1378, %v1093
    %v1380 = vpop.permute.xlu0 %1379
    %1382 = vset.pattern.permute.xlu0 12
    %1383 = vperm.xlu0 %1382, %v1094
    %v1384 = vpop.permute.xlu0 %1383
    %1386 = vset.pattern.permute.xlu0 12
    %1387 = vperm.xlu0 %1386, %v1095
    %v1388 = vpop.permute.xlu0 %1387
    %1390 = vset.pattern.permute.xlu0 12
    %1391 = vperm.xlu0 %1390, %v1096
    %v1392 = vpop.permute.xlu0 %1391
    %1394 = vset.pattern.permute.xlu0 12
    %1395 = vperm.xlu0 %1394, %v1097
    %v1396 = vpop.permute.xlu0 %1395
    %v1398 = vmul.f32 %v1360, %v1348
    %v1399 = vmul.f32 %v1364, %v1349
    %v1400 = vmul.f32 %v1368, %v1350
    %v1401 = vmul.f32 %v1372, %v1351
    %v1402 = vmul.f32 %v1376, %v1352
    %v1403 = vmul.f32 %v1380, %v1353
    %v1404 = vmul.f32 %v1384, %v1354
    %v1405 = vmul.f32 %v1388, %v1355
    %v1406 = vmul.f32 %v1392, %v1356
    %v1407 = vmul.f32 %v1396, %v1357
    %v1408 = vadd.f32 %v1328, %v1398
    %v1409 = vadd.f32 %v1329, %v1399
    %v1410 = vadd.f32 %v1330, %v1400
    %v1411 = vadd.f32 %v1331, %v1401
    %v1412 = vadd.f32 %v1332, %v1402
    %v1413 = vadd.f32 %v1333, %v1403
    %v1414 = vadd.f32 %v1334, %v1404
    %v1415 = vadd.f32 %v1335, %v1405
    %v1416 = vadd.f32 %v1336, %v1406
    %v1417 = vadd.f32 %v1337, %v1407
    %v1418 = vld [vmem:[#allocation5 + $0x520] sm:$0xf]
    %v1419 = vld [vmem:[#allocation5 + $0x530] sm:$0xf]
    %v1420 = vld [vmem:[#allocation5 + $0x540] sm:$0xf]
    %v1421 = vld [vmem:[#allocation5 + $0x550] sm:$0xf]
    %v1422 = vld [vmem:[#allocation5 + $0x560] sm:$0xf]
    %v1423 = vld [vmem:[#allocation5 + $0x570] sm:$0xf]
    %v1424 = vld [vmem:[#allocation5 + $0x580] sm:$0xf]
    %v1425 = vld [vmem:[#allocation5 + $0x590] sm:$0xf]
    %v1426 = vld [vmem:[#allocation5 + $0x5a0] sm:$0xf]
    %v1427 = vld [vmem:[#allocation5 + $0x5b0] sm:$0xf]
    %v1428 = vunpack.c.l.bf16 %v1418
    %v1429 = vunpack.c.l.bf16 %v1419
    %v1430 = vunpack.c.l.bf16 %v1420
    %v1431 = vunpack.c.l.bf16 %v1421
    %v1432 = vunpack.c.l.bf16 %v1422
    %v1433 = vunpack.c.l.bf16 %v1423
    %v1434 = vunpack.c.l.bf16 %v1424
    %v1435 = vunpack.c.l.bf16 %v1425
    %v1436 = vunpack.c.l.bf16 %v1426
    %v1437 = vunpack.c.l.bf16 %v1427
    %1438 = vset.pattern.permute.xlu0 16
    %1439 = vperm.xlu0 %1438, %v1088
    %v1440 = vpop.permute.xlu0 %1439
    %1442 = vset.pattern.permute.xlu0 16
    %1443 = vperm.xlu0 %1442, %v1089
    %v1444 = vpop.permute.xlu0 %1443
    %1446 = vset.pattern.permute.xlu0 16
    %1447 = vperm.xlu0 %1446, %v1090
    %v1448 = vpop.permute.xlu0 %1447
    %1450 = vset.pattern.permute.xlu0 16
    %1451 = vperm.xlu0 %1450, %v1091
    %v1452 = vpop.permute.xlu0 %1451
    %1454 = vset.pattern.permute.xlu0 16
    %1455 = vperm.xlu0 %1454, %v1092
    %v1456 = vpop.permute.xlu0 %1455
    %1458 = vset.pattern.permute.xlu0 16
    %1459 = vperm.xlu0 %1458, %v1093
    %v1460 = vpop.permute.xlu0 %1459
    %1462 = vset.pattern.permute.xlu0 16
    %1463 = vperm.xlu0 %1462, %v1094
    %v1464 = vpop.permute.xlu0 %1463
    %1466 = vset.pattern.permute.xlu0 16
    %1467 = vperm.xlu0 %1466, %v1095
    %v1468 = vpop.permute.xlu0 %1467
    %1470 = vset.pattern.permute.xlu0 16
    %1471 = vperm.xlu0 %1470, %v1096
    %v1472 = vpop.permute.xlu0 %1471
    %1474 = vset.pattern.permute.xlu0 16
    %1475 = vperm.xlu0 %1474, %v1097
    %v1476 = vpop.permute.xlu0 %1475
    %v1478 = vmul.f32 %v1440, %v1428
    %v1479 = vmul.f32 %v1444, %v1429
    %v1480 = vmul.f32 %v1448, %v1430
    %v1481 = vmul.f32 %v1452, %v1431
    %v1482 = vmul.f32 %v1456, %v1432
    %v1483 = vmul.f32 %v1460, %v1433
    %v1484 = vmul.f32 %v1464, %v1434
    %v1485 = vmul.f32 %v1468, %v1435
    %v1486 = vmul.f32 %v1472, %v1436
    %v1487 = vmul.f32 %v1476, %v1437
    %v1488 = vadd.f32 %v1408, %v1478
    %v1489 = vadd.f32 %v1409, %v1479
    %v1490 = vadd.f32 %v1410, %v1480
    %v1491 = vadd.f32 %v1411, %v1481
    %v1492 = vadd.f32 %v1412, %v1482
    %v1493 = vadd.f32 %v1413, %v1483
    %v1494 = vadd.f32 %v1414, %v1484
    %v1495 = vadd.f32 %v1415, %v1485
    %v1496 = vadd.f32 %v1416, %v1486
    %v1497 = vadd.f32 %v1417, %v1487
    %v1498 = vld [vmem:[#allocation5 + $0x7c0] sm:$0x3]
    %v1499 = vunpack.c.l.bf16 %v1498
    %v1500 = vadd.f32 %v1488, %v1489
    %v1501 = vadd.f32 %v1500, %v1490
    %v1502 = vadd.f32 %v1501, %v1491
    %v1503 = vadd.f32 %v1502, %v1492
    %v1504 = vadd.f32 %v1503, %v1493
    %v1505 = vadd.f32 %v1504, %v1494
    %v1506 = vadd.f32 %v1505, %v1495
    %v1507 = vadd.f32 %v1506, %v1496
    %v1508 = vadd.f32 %v1507, %v1497
    %v1509 = vrot.slane %v1508, 4
    %v1510 = vadd.f32 %v1508, %v1509
    %v1511 = vrot.slane %v1510, 2
    %v1512 = vadd.f32 %v1510, %v1511
    %v1513 = vrot.slane %v1512, 1
    %v1514 = vadd.f32 %v1512, %v1513
    %v1515 = vadd.f32 %v1514, %v1499
    %v1516 = vmax.f32 %v1515, 0.0
    %v1517 = vpack.c.bf16 %v1516, %v1516
    %v1518 = vld [vmem:[#allocation5 + $0x5c0] sm:$0xf]
    %v1519 = vld [vmem:[#allocation5 + $0x5d0] sm:$0xf]
    %v1520 = vld [vmem:[#allocation5 + $0x5e0] sm:$0xf]
    %v1521 = vld [vmem:[#allocation5 + $0x5f0] sm:$0xf]
    %v1522 = vld [vmem:[#allocation5 + $0x600] sm:$0xf]
    %v1523 = vld [vmem:[#allocation5 + $0x610] sm:$0xf]
    %v1524 = vld [vmem:[#allocation5 + $0x620] sm:$0xf]
    %v1525 = vld [vmem:[#allocation5 + $0x630] sm:$0xf]
    %v1526 = vld [vmem:[#allocation5 + $0x640] sm:$0xf]
    %v1527 = vld [vmem:[#allocation5 + $0x650] sm:$0xf]
    %v1528 = vld [vmem:[#allocation5 + $0x660] sm:$0xf]
    %v1529 = vld [vmem:[#allocation5 + $0x670] sm:$0xf]
    %v1530 = vld [vmem:[#allocation5 + $0x680] sm:$0xf]
    %v1531 = vld [vmem:[#allocation5 + $0x690] sm:$0xf]
    %v1532 = vld [vmem:[#allocation5 + $0x6a0] sm:$0xf]
    %v1533 = vld [vmem:[#allocation5 + $0x6b0] sm:$0xf]
    %v1550 = vunpack.c.l.b16 %v1518
    %v1551 = vunpack.c.l.b16 %v1519
    %v1552 = vunpack.c.l.b16 %v1520
    %v1553 = vunpack.c.l.b16 %v1521
    %v1554 = vunpack.c.l.b16 %v1522
    %v1555 = vunpack.c.l.b16 %v1523
    %v1556 = vunpack.c.l.b16 %v1524
    %v1557 = vunpack.c.l.b16 %v1525
    %v1558 = vunpack.c.l.b16 %v1526
    %v1559 = vunpack.c.l.b16 %v1527
    %v1560 = vunpack.c.l.b16 %v1528
    %v1561 = vunpack.c.l.b16 %v1529
    %v1562 = vunpack.c.l.b16 %v1530
    %v1563 = vunpack.c.l.b16 %v1531
    %v1564 = vunpack.c.l.b16 %v1532
    %v1565 = vunpack.c.l.b16 %v1533
    %v1566 = vpack.c.b16 %v1551, %v1550
    %v1567 = vpack.c.b16 %v1553, %v1552
    %v1568 = vpack.c.b16 %v1555, %v1554
    %v1569 = vpack.c.b16 %v1557, %v1556
    %v1570 = vpack.c.b16 %v1559, %v1558
    %v1571 = vpack.c.b16 %v1561, %v1560
    %v1572 = vpack.c.b16 %v1563, %v1562
    %v1573 = vpack.c.b16 %v1565, %v1564
    %v1583 = vrot.slane %v1499, 1
    %1585 = vmatprep.subr.bf16.mxu0 0
    %1586 = vmatpush1.bf16.msra.mxu0 %v1566
    %1587 = vmatprep.subr.bf16.mxu0 0
    %1588 = vmatpush1.bf16.msra.mxu0 %v1567
    %1589 = vmatprep.subr.bf16.mxu0 0
    %1590 = vmatpush1.bf16.msra.mxu0 %v1568
    %1591 = vmatprep.subr.bf16.mxu0 0
    %1592 = vmatpush1.bf16.msra.mxu0 %v1569
    %1593 = vmatprep.subr.bf16.mxu0 0
    %1594 = vmatpush1.bf16.msra.mxu0 %v1570
    %1595 = vmatprep.subr.bf16.mxu0 0
    %1596 = vmatpush1.bf16.msra.mxu0 %v1571
    %1597 = vmatprep.subr.bf16.mxu0 0
    %1598 = vmatpush1.bf16.msra.mxu0 %v1572
    %1599 = vmatprep.subr.bf16.mxu0 0
    %1600 = vmatpush1.bf16.msra.mxu0 %v1573
    %1601 = vmatprep.subr.bf16.mxu0 0
    %1602 = vmatpush1.bf16.msra.mxu0 0
    %1603 = vmatprep.subr.bf16.mxu0 0
    %1604 = vmatpush1.bf16.msra.mxu0 0
    %1605 = vmatprep.subr.bf16.mxu0 0
    %1606 = vmatpush1.bf16.msra.mxu0 0
    %1607 = vmatprep.subr.bf16.mxu0 0
    %1608 = vmatpush1.bf16.msra.mxu0 0
    %1609 = vmatprep.subr.bf16.mxu0 0
    %1610 = vmatpush1.bf16.msra.mxu0 0
    %1611 = vmatprep.subr.bf16.mxu0 0
    %1612 = vmatpush1.bf16.msra.mxu0 0
    %1613 = vmatprep.subr.bf16.mxu0 0
    %1614 = vmatpush1.bf16.msra.mxu0 0
    %1615 = vmatprep.subr.bf16.mxu0 0
    %1616 = vmatpush1.bf16.msra.mxu0 0
    %1617 = vmatprep.mubr.bf16.mxu0 0
    %1618 = vmatmul.mubr.bf16.gmra.mrb[0].mxu0 %v1517
    %v1619 = vpop.f32.mrb[0].mxu0
    %v1620 = vadd.f32 %v1583, %v1619
    %v1621 = vpop.f32.mrb[0].mxu0
    %v1622 = vpop.f32.mrb[0].mxu0
    %v1623 = vpop.f32.mrb[0].mxu0
    %1624 = vdwg.mxu0
    %v1625 = vmax.f32 %v1620, 0.0
    %v1626 = vpack.c.bf16 %v1625, %v1625
    %v1627 = vld [vmem:[#allocation5 + $0x6c0] sm:$0xf]
    %v1628 = vld [vmem:[#allocation5 + $0x6d0] sm:$0xf]
    %v1629 = vld [vmem:[#allocation5 + $0x6e0] sm:$0xf]
    %v1630 = vld [vmem:[#allocation5 + $0x6f0] sm:$0xf]
    %v1631 = vld [vmem:[#allocation5 + $0x700] sm:$0xf]
    %v1632 = vld [vmem:[#allocation5 + $0x710] sm:$0xf]
    %v1633 = vld [vmem:[#allocation5 + $0x720] sm:$0xf]
    %v1634 = vld [vmem:[#allocation5 + $0x730] sm:$0xf]
    %v1635 = vld [vmem:[#allocation5 + $0x740] sm:$0xf]
    %v1636 = vld [vmem:[#allocation5 + $0x750] sm:$0xf]
    %v1637 = vld [vmem:[#allocation5 + $0x760] sm:$0xf]
    %v1638 = vld [vmem:[#allocation5 + $0x770] sm:$0xf]
    %v1639 = vld [vmem:[#allocation5 + $0x780] sm:$0xf]
    %v1640 = vld [vmem:[#allocation5 + $0x790] sm:$0xf]
    %v1641 = vld [vmem:[#allocation5 + $0x7a0] sm:$0xf]
    %v1642 = vld [vmem:[#allocation5 + $0x7b0] sm:$0xf]
    %v1659 = vunpack.c.l.b16 %v1627
    %v1660 = vunpack.c.l.b16 %v1628
    %v1661 = vunpack.c.l.b16 %v1629
    %v1662 = vunpack.c.l.b16 %v1630
    %v1663 = vunpack.c.l.b16 %v1631
    %v1664 = vunpack.c.l.b16 %v1632
    %v1665 = vunpack.c.l.b16 %v1633
    %v1666 = vunpack.c.l.b16 %v1634
    %v1667 = vunpack.c.l.b16 %v1635
    %v1668 = vunpack.c.l.b16 %v1636
    %v1669 = vunpack.c.l.b16 %v1637
    %v1670 = vunpack.c.l.b16 %v1638
    %v1671 = vunpack.c.l.b16 %v1639
    %v1672 = vunpack.c.l.b16 %v1640
    %v1673 = vunpack.c.l.b16 %v1641
    %v1674 = vunpack.c.l.b16 %v1642
    %v1675 = vpack.c.b16 %v1660, %v1659
    %v1676 = vpack.c.b16 %v1662, %v1661
    %v1677 = vpack.c.b16 %v1664, %v1663
    %v1678 = vpack.c.b16 %v1666, %v1665
    %v1679 = vpack.c.b16 %v1668, %v1667
    %v1680 = vpack.c.b16 %v1670, %v1669
    %v1681 = vpack.c.b16 %v1672, %v1671
    %v1682 = vpack.c.b16 %v1674, %v1673
    %v1691 = vrot.slane %v1499, 2
    %1693 = vmatprep.subr.bf16.mxu0 0
    %1694 = vmatpush1.bf16.msra.mxu0 %v1675
    %1695 = vmatprep.subr.bf16.mxu0 0
    %1696 = vmatpush1.bf16.msra.mxu0 %v1676
    %1697 = vmatprep.subr.bf16.mxu0 0
    %1698 = vmatpush1.bf16.msra.mxu0 %v1677
    %1699 = vmatprep.subr.bf16.mxu0 0
    %1700 = vmatpush1.bf16.msra.mxu0 %v1678
    %1701 = vmatprep.subr.bf16.mxu0 0
    %1702 = vmatpush1.bf16.msra.mxu0 %v1679
    %1703 = vmatprep.subr.bf16.mxu0 0
    %1704 = vmatpush1.bf16.msra.mxu0 %v1680
    %1705 = vmatprep.subr.bf16.mxu0 0
    %1706 = vmatpush1.bf16.msra.mxu0 %v1681
    %1707 = vmatprep.subr.bf16.mxu0 0
    %1708 = vmatpush1.bf16.msra.mxu0 %v1682
    %1709 = vmatprep.subr.bf16.mxu0 0
    %1710 = vmatpush1.bf16.msra.mxu0 0
    %1711 = vmatprep.subr.bf16.mxu0 0
    %1712 = vmatpush1.bf16.msra.mxu0 0
    %1713 = vmatprep.subr.bf16.mxu0 0
    %1714 = vmatpush1.bf16.msra.mxu0 0
    %1715 = vmatprep.subr.bf16.mxu0 0
    %1716 = vmatpush1.bf16.msra.mxu0 0
    %1717 = vmatprep.subr.bf16.mxu0 0
    %1718 = vmatpush1.bf16.msra.mxu0 0
    %1719 = vmatprep.subr.bf16.mxu0 0
    %1720 = vmatpush1.bf16.msra.mxu0 0
    %1721 = vmatprep.subr.bf16.mxu0 0
    %1722 = vmatpush1.bf16.msra.mxu0 0
    %1723 = vmatprep.subr.bf16.mxu0 0
    %1724 = vmatpush1.bf16.msra.mxu0 0
    %1725 = vmatprep.mubr.bf16.mxu0 0
    %1726 = vmatmul.mubr.bf16.gmra.mrb[0].mxu0 %v1626
    %v1727 = vpop.f32.mrb[0].mxu0
    %v1728 = vadd.f32 %v1691, %v1727
    %v1729 = vpop.f32.mrb[0].mxu0
    %v1730 = vpop.f32.mrb[0].mxu0
    %v1731 = vpop.f32.mrb[0].mxu0
    %1732 = vdwg.mxu0
    %1733 = vst [vmem:[#allocation7] sm:$0x1] %v1728
    // Predicated region
    $region18: #{net_forward.1} parent=1 // pred_check
      _
    $region19: #{net_forward.1} parent=1 // pred_check_branch
      %1735 = sbr.rel (0) target = $region21
    $region20: #{net_forward.1} parent=1 // pred_region
      %s1737 = ssub.s32 16, 16
      %1738 = vsyncadd [#allocation4], %s1737
      %s1740 = sshll.u32 [#allocation7], 4
      %s1741 = int_to_ptr.vmem [resolvable:$true] %s1740
      %1743 = dma.vmem_to_hbm [thread:$0]  %s1741, 16, %s2, [#allocation4]
    $region21: #{net_forward.1} parent=1 // pred_fallthru
      _
    // Predicated region
    $region22: #{net_forward.1} parent=1 // pred_check
      _
    $region23: #{net_forward.1} parent=1 // pred_check_branch
      %1745 = sbr.rel (0) target = $region25
    $region24: #{net_forward.1} parent=1 // pred_region
      %1746 = dma.done [#allocation4], 16
    $region25: #{net_forward.1} parent=1 // pred_fallthru
      _
    %1747 = vsyncpa [#allocation3], 1
    %1748 = vsyncpa [#allocation6], 1
    %1749 = vsyncpa [#allocation4], 1

</llo_original>
